<compile_context>
chip_gen: v7x
topology: tpu7x:2x2x1
jax: 0.10.0
libtpu: 0.0.40
codegen_flags: <defaults>
</compile_context>

<pallas_src>
import functools

import jax
import jax.numpy as jnp
from jax import lax
from jax.experimental import pallas as pl
from jax.experimental.pallas import tpu as pltpu

LANE = 128          # lane-dense padding target for every feature dim
CONV_OUT_CH = 16    # channels of the tiny synthetic backbone conv

CONFIG = {
    "mode": "fusion",
    "num_classes": 5,
    "image_feature_dim": 32,
    "struct_feature_dim": 16,
    "fused_dim": 32,
    "structured_features": ["age", "gender", "pose_x", "pose_y", "blur", "illum"],
    "backbone": "simple",
}


def _round_up(x, m):
    return ((x + m - 1) // m) * m


# ----------------------------------------------------------------------------
# The single fused Pallas kernel
# ----------------------------------------------------------------------------
def _facenet_kernel(
    patches_ref,      # (block_b, tile_s, K_pad)  bf16  im2col patches
    structured_ref,   # (block_b, LANE)           f32   structured features
    conv_w_ref,       # (K_pad, LANE)             bf16  conv weight (im2col form)
    head_w_ref,       # (5, LANE, LANE)           f32   packed head weights
    head_b_ref,       # (8, LANE)                 f32   packed biases (row 0 = conv)
    out_ref,          # (block_b, LANE)           f32   padded logits
    acc_ref,          # (block_b, LANE)           f32   GAP accumulator (scratch)
    *, hw, tile_s, block_b,
):
    """grid = (batch_blocks, spatial_tiles).

    Per spatial tile: conv-as-matmul (bf16 MXU, f32 acc) + ReLU per batch
    element, then a masked ones-row matmul accumulates the spatial sum into
    acc_ref.  On the last spatial tile: finalize the global-average-pool and
    run all head layers with M = block_b, writing lane-dense padded logits.
    """
    s = pl.program_id(1)
    n_s = pl.num_programs(1)

    @pl.when(s == 0)
    def _():
        acc_ref[...] = jnp.zeros_like(acc_ref)

    # Validity row-vector: masks the zero-padded tail of the flattened spatial
    # dim (pad rows would otherwise contribute relu(bias) to the pool).
    lvec = lax.broadcasted_iota(jnp.int32, (1, tile_s), 1)
    mvec = ((s * tile_s + lvec) < hw).astype(jnp.float32)          # (1, tile_s)

    conv_b = head_b_ref[0:1, :]                                    # (1, LANE)
    for j in range(block_b):                                       # static unroll
        xj = patches_ref[j]                                        # (tile_s, K_pad) bf16
        cj = jnp.dot(xj, conv_w_ref[...],
                     preferred_element_type=jnp.float32)           # (tile_s, LANE)
        cj = jnp.maximum(cj + conv_b, 0.0)
        # masked spatial row-sum on the MXU (ones-row matmul)
        acc_ref[j:j + 1, :] += jnp.dot(mvec, cj,
                                       preferred_element_type=jnp.float32)

    # ---- on the last spatial tile: GAP finalize + head layers (M = block_b) --
    @pl.when(s == n_s - 1)
    def _():
        pooled = acc_ref[...] * (1.0 / hw)                         # (block_b, LANE)

        # ImageBranch head: Linear + ReLU
        img = jnp.maximum(
            jnp.dot(pooled, head_w_ref[0], preferred_element_type=jnp.float32)
            + head_b_ref[1:2, :], 0.0)

        # StructuredBranch: Linear + ReLU
        st = jnp.maximum(
            jnp.dot(structured_ref[...], head_w_ref[1],
                    preferred_element_type=jnp.float32)
            + head_b_ref[2:3, :], 0.0)

        # FusionModule: concat([img, st]) @ W  ==  img @ W_img + st @ W_struct
        fused = jnp.maximum(
            jnp.dot(img, head_w_ref[2], preferred_element_type=jnp.float32)
            + jnp.dot(st, head_w_ref[3], preferred_element_type=jnp.float32)
            + head_b_ref[3:4, :], 0.0)

        # Classifier
        logits = (jnp.dot(fused, head_w_ref[4], preferred_element_type=jnp.float32)
                  + head_b_ref[4:5, :])                            # (block_b, LANE)
        out_ref[...] = logits.astype(out_ref.dtype)


# ----------------------------------------------------------------------------
# Parameter construction (deterministic, synthetic — mirrors nn.Linear init)
# ----------------------------------------------------------------------------
def init_params(key, config):
    def dense(k, fan_in, fan_out):
        kw, kb = jax.random.split(k)
        scale = 1.0 / jnp.sqrt(jnp.float32(fan_in))
        w = jax.random.uniform(kw, (fan_in, fan_out), jnp.float32, -scale, scale)
        b = jax.random.uniform(kb, (fan_out,), jnp.float32, -scale, scale)
        return w, b

    keys = jax.random.split(key, 5)
    in_ch, kh, kw_ = 3, 3, 3
    struct_in = len(config["structured_features"])

    params = {}
    params["conv_w"], params["conv_b"] = dense(keys[0], in_ch * kh * kw_, CONV_OUT_CH)
    params["img_fc_w"], params["img_fc_b"] = dense(
        keys[1], CONV_OUT_CH, config["image_feature_dim"])
    params["struct_w"], params["struct_b"] = dense(
        keys[2], struct_in, config["struct_feature_dim"])
    params["fuse_w"], params["fuse_b"] = dense(
        keys[3],
        config["image_feature_dim"] + config["struct_feature_dim"],
        config["fused_dim"])
    params["cls_w"], params["cls_b"] = dense(
        keys[4], config["fused_dim"], config["num_classes"])
    return params


# ----------------------------------------------------------------------------
# Forward pass: im2col (layout glue) + one fused Pallas kernel
# ----------------------------------------------------------------------------
def _pad2(a, rows, cols):
    r, c = a.shape
    return jnp.pad(a, ((0, rows - r), (0, cols - c)))


@jax.jit
def facenet_forward(params, image, structured):
    """FaceNet fusion-mode forward: image [B,3,H,W] NCHW, structured [B,S] -> logits [B,num_classes]."""
    B, C, H, W = image.shape
    HW = H * W
    KH = KW = 3
    CKK = C * KH * KW
    K_pad = _round_up(CKK, 8)

    # ---- blocking decisions (review: big spatial tile + batch blocking) -----
    # Batch blocking: 8-row batch blocks for large B, whole batch when small.
    block_b = B if B <= 8 else 8
    B_pad = _round_up(B, block_b)
    n_b = B_pad // block_b
    # Spatial tiling: one big tile up to 2048 rows; pad rows are masked
    # in-kernel so any HW works.  Toy 16x16 -> tile_s = 256, n_s = 1.
    tile_s = min(_round_up(HW, 16), 2048)
    HW_pad = _round_up(HW, tile_s)
    n_s = HW_pad // tile_s
    # VMEM use: block_b * tile_s * K_pad * 2B * 2 buffers <= ~2 MiB  (safe on
    # v7x's 64 MiB physical / 32 MiB scoped VMEM; no vmem_limit override).

    # im2col patch extraction emitted directly channel-last, cast to bf16,
    # single pad covering batch / spatial-tail / K padding.
    # TODO(synk): build patches in-kernel from the raw NHWC image for large
    # images (removes the ~9x HBM expansion of this tensor).
    patches = jax.lax.conv_general_dilated_patches(
        image, filter_shape=(KH, KW), window_strides=(1, 1), padding="SAME",
        dimension_numbers=("NCHW", "OIHW", "NHWC"),
    )                                                   # [B, H, W, C*KH*KW]
    patches = patches.reshape(B, HW, CKK).astype(jnp.bfloat16)
    patches = jnp.pad(patches,
                      ((0, B_pad - B), (0, HW_pad - HW), (0, K_pad - CKK)))

    # Structured input padded lane-dense to 128.
    S_in = structured.shape[1]
    structured_p = jnp.pad(structured.astype(jnp.float32),
                           ((0, B_pad - B), (0, LANE - S_in)))

    img_dim = params["img_fc_w"].shape[1]
    num_classes = params["cls_w"].shape[1]

    # Conv weight (im2col form), bf16, lane-dense.
    conv_w_p = _pad2(params["conv_w"], K_pad, LANE).astype(jnp.bfloat16)

    # Packed head weights: [img_fc, struct, fuse_img, fuse_struct, cls].
    head_w = jnp.stack([
        _pad2(params["img_fc_w"], LANE, LANE),
        _pad2(params["struct_w"], LANE, LANE),
        _pad2(params["fuse_w"][:img_dim], LANE, LANE),
        _pad2(params["fuse_w"][img_dim:], LANE, LANE),
        _pad2(params["cls_w"], LANE, LANE),
    ])                                                  # (5, 128, 128) f32

    # Packed biases: rows [conv, img_fc, struct, fuse, cls, 0, 0, 0].
    def _brow(b):
        return jnp.pad(b, (0, LANE - b.shape[0]))
    head_b = jnp.stack([_brow(params["conv_b"]), _brow(params["img_fc_b"]),
                        _brow(params["struct_b"]), _brow(params["fuse_b"]),
                        _brow(params["cls_b"])])
    head_b = jnp.pad(head_b, ((0, 8 - head_b.shape[0]), (0, 0)))   # (8, 128)

    kernel = functools.partial(_facenet_kernel, hw=HW, tile_s=tile_s,
                               block_b=block_b)
    full2 = lambda i, s: (0, 0)          # resident weight blocks
    full3 = lambda i, s: (0, 0, 0)

    out_padded = pl.pallas_call(
        kernel,
        out_shape=jax.ShapeDtypeStruct((B_pad, LANE), jnp.float32),
        grid_spec=pltpu.PrefetchScalarGridSpec(
            num_scalar_prefetch=0,
            grid=(n_b, n_s),
            in_specs=[
                pl.BlockSpec((block_b, tile_s, K_pad), lambda i, s: (i, s, 0)),  # patches
                pl.BlockSpec((block_b, LANE), lambda i, s: (i, 0)),              # structured
                pl.BlockSpec((K_pad, LANE), full2),                              # conv_w
                pl.BlockSpec((5, LANE, LANE), full3),                            # head_w slab
                pl.BlockSpec((8, LANE), full2),                                  # head_b slab
            ],
            out_specs=pl.BlockSpec((block_b, LANE), lambda i, s: (i, 0)),
            scratch_shapes=[pltpu.VMEM((block_b, LANE), jnp.float32)],           # GAP acc
        ),
        compiler_params=pltpu.CompilerParams(
            dimension_semantics=("parallel", "arbitrary"),
        ),
    )(patches, structured_p, conv_w_p, head_w, head_b)

    return out_padded[:B, :num_classes]


# ----------------------------------------------------------------------------
# Pure-JAX reference (same math, f32) for a correctness cross-check
# ----------------------------------------------------------------------------
def reference_forward(params, image, structured):
    B, C, H, W = image.shape
    patches = jax.lax.conv_general_dilated_patches(
        image, (3, 3), (1, 1), "SAME",
        dimension_numbers=("NCHW", "OIHW", "NHWC")).reshape(B, H * W, -1)
    conv = jax.nn.relu(patches @ params["conv_w"] + params["conv_b"])
    pooled = conv.mean(axis=1)
    img = jax.nn.relu(pooled @ params["img_fc_w"] + params["img_fc_b"])
    st = jax.nn.relu(structured @ params["struct_w"] + params["struct_b"])
    fused = jax.nn.relu(
        jnp.concatenate([img, st], axis=-1) @ params["fuse_w"] + params["fuse_b"])
    return fused @ params["cls_w"] + params["cls_b"]


# ----------------------------------------------------------------------------
if __name__ == "__main__":
    key = jax.random.PRNGKey(0)
    k_params, k_img, k_struct = jax.random.split(key, 3)

    params = init_params(k_params, CONFIG)

    B, H, W = 2, 16, 16
    image = jax.random.normal(k_img, (B, 3, H, W), dtype=jnp.float32)  # NCHW like PyTorch
    structured = jax.random.normal(
        k_struct, (B, len(CONFIG["structured_features"])), dtype=jnp.float32)

    logits = facenet_forward(params, image, structured)
    logits = jax.block_until_ready(logits)

    assert logits.shape == (B, CONFIG["num_classes"]), logits.shape
    assert logits.dtype == jnp.float32
    assert bool(jnp.all(jnp.isfinite(logits)))

    ref = reference_forward(params, image, structured)
    assert bool(jnp.allclose(logits, ref, rtol=5e-2, atol=5e-2)), (logits, ref)

    print("KERNEL_OK")
</pallas_src>

<mosaic_0001>
module attributes {stable_mosaic.version = 11 : i64} {
  func.func @_facenet_kernel(%arg0: i32, %arg1: i32, %arg2: memref<2x256x32xbf16, #tpu.memory_space<vmem>>, %arg3: memref<2x128xf32, #tpu.memory_space<vmem>>, %arg4: memref<32x128xbf16, #tpu.memory_space<vmem>>, %arg5: memref<5x128x128xf32, #tpu.memory_space<vmem>>, %arg6: memref<8x128xf32, #tpu.memory_space<vmem>>, %arg7: memref<2x128xf32, #tpu.memory_space<vmem>>, %arg8: memref<2x128xf32, #tpu.memory_space<vmem>>) attributes {dimension_semantics = [#tpu.dimension_semantics<parallel>, #tpu.dimension_semantics<arbitrary>], iteration_bounds = array<i64: 1, 1>, scalar_prefetch = 0 : i64, scratch_operands = 1 : i64, tpu.core_type = #tpu.core_type<tc>, window_params = [{transform_indices = @transform_0, window_bounds = array<i64: 2, 256, 32>}, {transform_indices = @transform_1, window_bounds = array<i64: 2, 128>}, {pipeline_mode = #tpu.pipeline_mode<synchronous>, transform_indices = @transform_2, window_bounds = array<i64: 32, 128>}, {pipeline_mode = #tpu.pipeline_mode<synchronous>, transform_indices = @transform_3, window_bounds = array<i64: 5, 128, 128>}, {pipeline_mode = #tpu.pipeline_mode<synchronous>, transform_indices = @transform_4, window_bounds = array<i64: 8, 128>}, {transform_indices = @transform_5, window_bounds = array<i64: 2, 128>}]} {
    %c0_i32 = arith.constant 0 : i32
    %0 = arith.cmpi eq, %arg1, %c0_i32 : i32
    %1 = arith.extui %0 : i1 to i32
    %c0_i32_0 = arith.constant 0 : i32
    %2 = arith.cmpi ne, %1, %c0_i32_0 : i32
    scf.if %2 {
      %cst_27 = arith.constant 0.000000e+00 : f32
      %39 = vector.broadcast %cst_27 : f32 to vector<2x128xf32>
      %c0_28 = arith.constant 0 : index
      %c0_29 = arith.constant 0 : index
      %40 = vector.load %arg8[%c0_28, %c0_29] : memref<2x128xf32, #tpu.memory_space<vmem>>, vector<2x128xf32>
      tpu.vector_store %arg8[%c0_28, %c0_29], %39 {strides = array<i32>} : memref<2x128xf32, #tpu.memory_space<vmem>>, vector<2x128xf32>,
    } else {
    }
    %3 = tpu.iota {dimensions = array<i32: 1>} : vector<1x256xi32>
    %c256_i32 = arith.constant 256 : i32
    %4 = arith.muli %arg1, %c256_i32 : i32
    %5 = vector.broadcast %4 : i32 to vector<1x256xi32>
    %6 = arith.addi %5, %3 : vector<1x256xi32>
    %c256_i32_1 = arith.constant 256 : i32
    %7 = vector.broadcast %c256_i32_1 : i32 to vector<1x256xi32>
    %8 = arith.cmpi slt, %6, %7 : vector<1x256xi32>
    %9 = arith.extui %8 : vector<1x256xi1> to vector<1x256xi32>
    %10 = arith.sitofp %9 : vector<1x256xi32> to vector<1x256xf32>
    %c0 = arith.constant 0 : index
    %c0_2 = arith.constant 0 : index
    %11 = vector.load %arg6[%c0, %c0_2] : memref<8x128xf32, #tpu.memory_space<vmem>>, vector<1x128xf32>
    %c0_3 = arith.constant 0 : index
    %c0_4 = arith.constant 0 : index
    %c0_5 = arith.constant 0 : index
    %12 = vector.load %arg2[%c0_3, %c0_4, %c0_5] : memref<2x256x32xbf16, #tpu.memory_space<vmem>>, vector<1x256x32xbf16>
    %13 = vector.shape_cast %12 : vector<1x256x32xbf16> to vector<256x32xbf16>
    %c0_6 = arith.constant 0 : index
    %c0_7 = arith.constant 0 : index
    %14 = vector.load %arg4[%c0_6, %c0_7] : memref<32x128xbf16, #tpu.memory_space<vmem>>, vector<32x128xbf16>
    %cst = arith.constant dense<0.000000e+00> : vector<256x128xf32>
    %15 = tpu.matmul %13, %14, %cst {dimension_numbers = #tpu.dot_dimension_numbers<[1], [0], [0], [1], [0, 0, 1, 1], [], []>} : vector<256x32xbf16>, vector<32x128xbf16>, vector<256x128xf32> -> vector<256x128xf32>
    %16 = vector.broadcast %11 : vector<1x128xf32> to vector<256x128xf32>
    %17 = arith.addf %15, %16 : vector<256x128xf32>
    %cst_8 = arith.constant 0.000000e+00 : f32
    %18 = vector.broadcast %cst_8 : f32 to vector<256x128xf32>
    %19 = arith.maximumf %17, %18 : vector<256x128xf32>
    %c0_9 = arith.constant 0 : index
    %c0_10 = arith.constant 0 : index
    %20 = vector.load %arg8[%c0_9, %c0_10] : memref<2x128xf32, #tpu.memory_space<vmem>>, vector<1x128xf32>
    %cst_11 = arith.constant dense<0.000000e+00> : vector<1x128xf32>
    %21 = tpu.matmul %10, %19, %cst_11 {dimension_numbers = #tpu.dot_dimension_numbers<[1], [0], [0], [1], [0, 0, 1, 1], [], []>} : vector<1x256xf32>, vector<256x128xf32>, vector<1x128xf32> -> vector<1x128xf32>
    %22 = arith.addf %20, %21 : vector<1x128xf32>
    %c0_12 = arith.constant 0 : index
    %c0_13 = arith.constant 0 : index
    %23 = vector.load %arg8[%c0_12, %c0_13] : memref<2x128xf32, #tpu.memory_space<vmem>>, vector<1x128xf32>
    tpu.vector_store %arg8[%c0_12, %c0_13], %22 {strides = array<i32>} : memref<2x128xf32, #tpu.memory_space<vmem>>, vector<1x128xf32>,
    %c1 = arith.constant 1 : index
    %c0_14 = arith.constant 0 : index
    %c0_15 = arith.constant 0 : index
    %24 = vector.load %arg2[%c1, %c0_14, %c0_15] : memref<2x256x32xbf16, #tpu.memory_space<vmem>>, vector<1x256x32xbf16>
    %25 = vector.shape_cast %24 : vector<1x256x32xbf16> to vector<256x32xbf16>
    %c0_16 = arith.constant 0 : index
    %c0_17 = arith.constant 0 : index
    %26 = vector.load %arg4[%c0_16, %c0_17] : memref<32x128xbf16, #tpu.memory_space<vmem>>, vector<32x128xbf16>
    %cst_18 = arith.constant dense<0.000000e+00> : vector<256x128xf32>
    %27 = tpu.matmul %25, %26, %cst_18 {dimension_numbers = #tpu.dot_dimension_numbers<[1], [0], [0], [1], [0, 0, 1, 1], [], []>} : vector<256x32xbf16>, vector<32x128xbf16>, vector<256x128xf32> -> vector<256x128xf32>
    %28 = vector.broadcast %11 : vector<1x128xf32> to vector<256x128xf32>
    %29 = arith.addf %27, %28 : vector<256x128xf32>
    %cst_19 = arith.constant 0.000000e+00 : f32
    %30 = vector.broadcast %cst_19 : f32 to vector<256x128xf32>
    %31 = arith.maximumf %29, %30 : vector<256x128xf32>
    %c1_20 = arith.constant 1 : index
    %c0_21 = arith.constant 0 : index
    %32 = vector.load %arg8[%c1_20, %c0_21] : memref<2x128xf32, #tpu.memory_space<vmem>>, vector<1x128xf32>
    %cst_22 = arith.constant dense<0.000000e+00> : vector<1x128xf32>
    %33 = tpu.matmul %10, %31, %cst_22 {dimension_numbers = #tpu.dot_dimension_numbers<[1], [0], [0], [1], [0, 0, 1, 1], [], []>} : vector<1x256xf32>, vector<256x128xf32>, vector<1x128xf32> -> vector<1x128xf32>
    %34 = arith.addf %32, %33 : vector<1x128xf32>
    %c1_23 = arith.constant 1 : index
    %c0_24 = arith.constant 0 : index
    %35 = vector.load %arg8[%c1_23, %c0_24] : memref<2x128xf32, #tpu.memory_space<vmem>>, vector<1x128xf32>
    tpu.vector_store %arg8[%c1_23, %c0_24], %34 {strides = array<i32>} : memref<2x128xf32, #tpu.memory_space<vmem>>, vector<1x128xf32>,
    %c0_i32_25 = arith.constant 0 : i32
    %36 = arith.cmpi eq, %arg1, %c0_i32_25 : i32
    %37 = arith.extui %36 : i1 to i32
    %c0_i32_26 = arith.constant 0 : i32
    %38 = arith.cmpi ne, %37, %c0_i32_26 : i32
    scf.if %38 {
      %c0_27 = arith.constant 0 : index
      %c0_28 = arith.constant 0 : index
      %39 = vector.load %arg8[%c0_27, %c0_28] : memref<2x128xf32, #tpu.memory_space<vmem>>, vector<2x128xf32>
      %cst_29 = arith.constant 3.906250e-03 : f32
      %40 = vector.broadcast %cst_29 : f32 to vector<2x128xf32>
      %41 = arith.mulf %39, %40 : vector<2x128xf32>
      %c0_30 = arith.constant 0 : index
      %c0_31 = arith.constant 0 : index
      %c0_32 = arith.constant 0 : index
      %42 = vector.load %arg5[%c0_30, %c0_31, %c0_32] : memref<5x128x128xf32, #tpu.memory_space<vmem>>, vector<1x128x128xf32>
      %43 = vector.shape_cast %42 : vector<1x128x128xf32> to vector<128x128xf32>
      %cst_33 = arith.constant dense<0.000000e+00> : vector<2x128xf32>
      %44 = tpu.matmul %41, %43, %cst_33 {dimension_numbers = #tpu.dot_dimension_numbers<[1], [0], [0], [1], [0, 0, 1, 1], [], []>} : vector<2x128xf32>, vector<128x128xf32>, vector<2x128xf32> -> vector<2x128xf32>
      %c1_34 = arith.constant 1 : index
      %c0_35 = arith.constant 0 : index
      %45 = vector.load %arg6[%c1_34, %c0_35] : memref<8x128xf32, #tpu.memory_space<vmem>>, vector<1x128xf32>
      %46 = vector.broadcast %45 : vector<1x128xf32> to vector<2x128xf32>
      %47 = arith.addf %44, %46 : vector<2x128xf32>
      %cst_36 = arith.constant 0.000000e+00 : f32
      %48 = vector.broadcast %cst_36 : f32 to vector<2x128xf32>
      %49 = arith.maximumf %47, %48 : vector<2x128xf32>
      %c0_37 = arith.constant 0 : index
      %c0_38 = arith.constant 0 : index
      %50 = vector.load %arg3[%c0_37, %c0_38] : memref<2x128xf32, #tpu.memory_space<vmem>>, vector<2x128xf32>
      %c1_39 = arith.constant 1 : index
      %c0_40 = arith.constant 0 : index
      %c0_41 = arith.constant 0 : index
      %51 = vector.load %arg5[%c1_39, %c0_40, %c0_41] : memref<5x128x128xf32, #tpu.memory_space<vmem>>, vector<1x128x128xf32>
      %52 = vector.shape_cast %51 : vector<1x128x128xf32> to vector<128x128xf32>
      %cst_42 = arith.constant dense<0.000000e+00> : vector<2x128xf32>
      %53 = tpu.matmul %50, %52, %cst_42 {dimension_numbers = #tpu.dot_dimension_numbers<[1], [0], [0], [1], [0, 0, 1, 1], [], []>} : vector<2x128xf32>, vector<128x128xf32>, vector<2x128xf32> -> vector<2x128xf32>
      %c2 = arith.constant 2 : index
      %c0_43 = arith.constant 0 : index
      %54 = vector.load %arg6[%c2, %c0_43] : memref<8x128xf32, #tpu.memory_space<vmem>>, vector<1x128xf32>
      %55 = vector.broadcast %54 : vector<1x128xf32> to vector<2x128xf32>
      %56 = arith.addf %53, %55 : vector<2x128xf32>
      %cst_44 = arith.constant 0.000000e+00 : f32
      %57 = vector.broadcast %cst_44 : f32 to vector<2x128xf32>
      %58 = arith.maximumf %56, %57 : vector<2x128xf32>
      %c2_45 = arith.constant 2 : index
      %c0_46 = arith.constant 0 : index
      %c0_47 = arith.constant 0 : index
      %59 = vector.load %arg5[%c2_45, %c0_46, %c0_47] : memref<5x128x128xf32, #tpu.memory_space<vmem>>, vector<1x128x128xf32>
      %60 = vector.shape_cast %59 : vector<1x128x128xf32> to vector<128x128xf32>
      %cst_48 = arith.constant dense<0.000000e+00> : vector<2x128xf32>
      %61 = tpu.matmul %49, %60, %cst_48 {dimension_numbers = #tpu.dot_dimension_numbers<[1], [0], [0], [1], [0, 0, 1, 1], [], []>} : vector<2x128xf32>, vector<128x128xf32>, vector<2x128xf32> -> vector<2x128xf32>
      %c3 = arith.constant 3 : index
      %c0_49 = arith.constant 0 : index
      %c0_50 = arith.constant 0 : index
      %62 = vector.load %arg5[%c3, %c0_49, %c0_50] : memref<5x128x128xf32, #tpu.memory_space<vmem>>, vector<1x128x128xf32>
      %63 = vector.shape_cast %62 : vector<1x128x128xf32> to vector<128x128xf32>
      %cst_51 = arith.constant dense<0.000000e+00> : vector<2x128xf32>
      %64 = tpu.matmul %58, %63, %cst_51 {dimension_numbers = #tpu.dot_dimension_numbers<[1], [0], [0], [1], [0, 0, 1, 1], [], []>} : vector<2x128xf32>, vector<128x128xf32>, vector<2x128xf32> -> vector<2x128xf32>
      %65 = arith.addf %61, %64 : vector<2x128xf32>
      %c3_52 = arith.constant 3 : index
      %c0_53 = arith.constant 0 : index
      %66 = vector.load %arg6[%c3_52, %c0_53] : memref<8x128xf32, #tpu.memory_space<vmem>>, vector<1x128xf32>
      %67 = vector.broadcast %66 : vector<1x128xf32> to vector<2x128xf32>
      %68 = arith.addf %65, %67 : vector<2x128xf32>
      %cst_54 = arith.constant 0.000000e+00 : f32
      %69 = vector.broadcast %cst_54 : f32 to vector<2x128xf32>
      %70 = arith.maximumf %68, %69 : vector<2x128xf32>
      %c4 = arith.constant 4 : index
      %c0_55 = arith.constant 0 : index
      %c0_56 = arith.constant 0 : index
      %71 = vector.load %arg5[%c4, %c0_55, %c0_56] : memref<5x128x128xf32, #tpu.memory_space<vmem>>, vector<1x128x128xf32>
      %72 = vector.shape_cast %71 : vector<1x128x128xf32> to vector<128x128xf32>
      %cst_57 = arith.constant dense<0.000000e+00> : vector<2x128xf32>
      %73 = tpu.matmul %70, %72, %cst_57 {dimension_numbers = #tpu.dot_dimension_numbers<[1], [0], [0], [1], [0, 0, 1, 1], [], []>} : vector<2x128xf32>, vector<128x128xf32>, vector<2x128xf32> -> vector<2x128xf32>
      %c4_58 = arith.constant 4 : index
      %c0_59 = arith.constant 0 : index
      %74 = vector.load %arg6[%c4_58, %c0_59] : memref<8x128xf32, #tpu.memory_space<vmem>>, vector<1x128xf32>
      %75 = vector.broadcast %74 : vector<1x128xf32> to vector<2x128xf32>
      %76 = arith.addf %73, %75 : vector<2x128xf32>
      %c0_60 = arith.constant 0 : index
      %c0_61 = arith.constant 0 : index
      %77 = vector.load %arg7[%c0_60, %c0_61] : memref<2x128xf32, #tpu.memory_space<vmem>>, vector<2x128xf32>
      tpu.vector_store %arg7[%c0_60, %c0_61], %76 {strides = array<i32>} : memref<2x128xf32, #tpu.memory_space<vmem>>, vector<2x128xf32>,
    } else {
    }
    return
  }
  func.func @transform_0(%arg0: i32, %arg1: i32) -> (i32, i32, i32) {
    %c0_i32 = arith.constant 0 : i32
    %c0_i32_0 = arith.constant 0 : i32
    return %arg0, %arg1, %c0_i32 : i32, i32, i32
  }
  func.func @transform_1(%arg0: i32, %arg1: i32) -> (i32, i32) {
    %c0_i32 = arith.constant 0 : i32
    %c0_i32_0 = arith.constant 0 : i32
    return %arg0, %c0_i32 : i32, i32
  }
  func.func @transform_2(%arg0: i32, %arg1: i32) -> (i32, i32) {
    %c0_i32 = arith.constant 0 : i32
    %c0_i32_0 = arith.constant 0 : i32
    %c0_i32_1 = arith.constant 0 : i32
    return %c0_i32, %c0_i32_0 : i32, i32
  }
  func.func @transform_3(%arg0: i32, %arg1: i32) -> (i32, i32, i32) {
    %c0_i32 = arith.constant 0 : i32
    %c0_i32_0 = arith.constant 0 : i32
    %c0_i32_1 = arith.constant 0 : i32
    %c0_i32_2 = arith.constant 0 : i32
    return %c0_i32, %c0_i32_0, %c0_i32_1 : i32, i32, i32
  }
  func.func @transform_4(%arg0: i32, %arg1: i32) -> (i32, i32) {
    %c0_i32 = arith.constant 0 : i32
    %c0_i32_0 = arith.constant 0 : i32
    %c0_i32_1 = arith.constant 0 : i32
    return %c0_i32, %c0_i32_0 : i32, i32
  }
  func.func @transform_5(%arg0: i32, %arg1: i32) -> (i32, i32) {
    %c0_i32 = arith.constant 0 : i32
    %c0_i32_0 = arith.constant 0 : i32
    return %arg0, %c0_i32 : i32, i32
  }
}

</mosaic_0001>

<llo_original>
// kernel: facenet_forward.1
$region0: #{facenet_forward.1}
  #allocation0 [shape = 'u32[]', space=smem, size = 0x4, offset = 0x4, fixed_abs, tag = 'smem constant byte address 0x4 - core index']
  #allocation1 [shape = 'u32[144,128]{1,0:T(1,128)}', space=vmem, size = 0x12000, scoped, tag = 'internal scratch']
  #allocation2 [shape = 'f32[2,128]{1,0:T(2,128)}', space=vmem, size = 0x400, scoped, tag = 'scratch operand']
  %s0 = inlined_call_operand.vmem [shape: bf16[2,256,32], index: 0, kind: input, shape index: {}]
  %s1 = inlined_call_operand.vmem [shape: f32[2,128], index: 1, kind: input, shape index: {}]
  %s2 = inlined_call_operand.vmem [shape: bf16[32,128], index: 2, kind: input, shape index: {}]
  %s3 = inlined_call_operand.vmem [shape: f32[5,128,128], index: 3, kind: input, shape index: {}]
  %s4 = inlined_call_operand.vmem [shape: f32[8,128], index: 4, kind: input, shape index: {}]
  %s5 = inlined_call_operand.hbm [shape: f32[2,128], index: 5, kind: output, shape index: {}]
  %s6 = sld [smem:[#allocation0]]
  $region38: #{facenet_forward.1} parent=0
    _
  %s8 = ssub.s32 1, %s6
  %s9 = scalar_select 0, %s8, %s6
  $region1: #{facenet_forward.1} parent=0
    #allocation3 [shape = 'u8[1024]{0}', space=vmem, size = 0x400, scoped, tag = 'output window, operand 0, single buffered']
    #allocation4 [shape = 's32[1]{0}', space=sflag, size = 0x4, scoped, tag = 'scoped memory for facenet_forward.1']
    %10 = vsyncpa [#allocation4], 0
    // Predicated region
    $region2: #{facenet_forward.1} parent=1 // pred_check
      _
    $region3: #{facenet_forward.1} parent=1 // pred_check_branch
      %12 = sbr.rel (0) target = $region5
    $region4: #{facenet_forward.1} parent=1 // pred_region
      _
    $region5: #{facenet_forward.1} parent=1 // pred_fallthru
      _
    // Predicated region
    $region6: #{facenet_forward.1} parent=1 // pred_check
      _
    $region7: #{facenet_forward.1} parent=1 // pred_check_branch
      %14 = sbr.rel (0) target = $region9
    $region8: #{facenet_forward.1} parent=1 // pred_region
      _
    $region9: #{facenet_forward.1} parent=1 // pred_fallthru
      _
    // Predicated region
    $region10: #{facenet_forward.1} parent=1 // pred_check
      _
    $region11: #{facenet_forward.1} parent=1 // pred_check_branch
      %16 = sbr.rel (0) target = $region13
    $region12: #{facenet_forward.1} parent=1 // pred_region
      _
    $region13: #{facenet_forward.1} parent=1 // pred_fallthru
      _
    // Predicated region
    $region14: #{facenet_forward.1} parent=1 // pred_check
      _
    $region15: #{facenet_forward.1} parent=1 // pred_check_branch
      %18 = sbr.rel (0) target = $region17
    $region16: #{facenet_forward.1} parent=1 // pred_region
      _
    $region17: #{facenet_forward.1} parent=1 // pred_fallthru
      _
    // Predicated region
    $region18: #{facenet_forward.1} parent=1 // pred_check
      _
    $region19: #{facenet_forward.1} parent=1 // pred_check_branch
      %20 = sbr.rel (0) target = $region21
    $region20: #{facenet_forward.1} parent=1 // pred_region
      _
    $region21: #{facenet_forward.1} parent=1 // pred_fallthru
      _
    %p22 = scmp.eq.s32.totalorder 0, 0
    // Predicated region
    $region22: #{facenet_forward.1} parent=1 // pred_check
      %p23 = pneg %p22
    $region23: #{facenet_forward.1} parent=1 // pred_check_branch
      %25 = sbr.rel (%p23) target = $region25
    $region24: #{facenet_forward.1} parent=1 // pred_region
      %26 = vst [vmem:[#allocation2] sm:$0x3] 0.0
    $region25: #{facenet_forward.1} parent=1 // pred_fallthru
      _
    %v27 = vlaneseq
    %v28 = vand.u32 %v27, 127
    %v29 = vadd.s32 %v28, 128
    %s30 = smul.u32 0, 256
    %v31 = vstv %s30
    %v32 = vadd.s32 %v31, %v28
    %v33 = vadd.s32 %v31, %v29
    %vm34 = vcmp.lt.s32.totalorder %v32, 256
    %vm35 = vcmp.lt.s32.totalorder %v33, 256
    %v36 = vsel %vm34, 1, 0
    %v37 = vsel %vm35, 1, 0
    %v38 = vcvt.s32.f32 %v36
    %v39 = vcvt.s32.f32 %v37
    %v40 = vld [vmem:[%s4] sm:$0x1]
    %v41 = vld [vmem:[%s0] sm:$0xf]
    %v42 = vld [vmem:[%s0 + $0x4] sm:$0xf]
    %v43 = vld [vmem:[%s0 + $0x8] sm:$0xf]
    %v44 = vld [vmem:[%s0 + $0xc] sm:$0xf]
    %v45 = vld [vmem:[%s0 + $0x10] sm:$0xf]
    %v46 = vld [vmem:[%s0 + $0x14] sm:$0xf]
    %v47 = vld [vmem:[%s0 + $0x18] sm:$0xf]
    %v48 = vld [vmem:[%s0 + $0x1c] sm:$0xf]
    %v49 = vld [vmem:[%s0 + $0x20] sm:$0xf]
    %v50 = vld [vmem:[%s0 + $0x24] sm:$0xf]
    %v51 = vld [vmem:[%s0 + $0x28] sm:$0xf]
    %v52 = vld [vmem:[%s0 + $0x2c] sm:$0xf]
    %v53 = vld [vmem:[%s0 + $0x30] sm:$0xf]
    %v54 = vld [vmem:[%s0 + $0x34] sm:$0xf]
    %v55 = vld [vmem:[%s0 + $0x38] sm:$0xf]
    %v56 = vld [vmem:[%s0 + $0x3c] sm:$0xf]
    %v57 = vld [vmem:[%s0 + $0x40] sm:$0xf]
    %v58 = vld [vmem:[%s0 + $0x44] sm:$0xf]
    %v59 = vld [vmem:[%s0 + $0x48] sm:$0xf]
    %v60 = vld [vmem:[%s0 + $0x4c] sm:$0xf]
    %v61 = vld [vmem:[%s0 + $0x50] sm:$0xf]
    %v62 = vld [vmem:[%s0 + $0x54] sm:$0xf]
    %v63 = vld [vmem:[%s0 + $0x58] sm:$0xf]
    %v64 = vld [vmem:[%s0 + $0x5c] sm:$0xf]
    %v65 = vld [vmem:[%s0 + $0x60] sm:$0xf]
    %v66 = vld [vmem:[%s0 + $0x64] sm:$0xf]
    %v67 = vld [vmem:[%s0 + $0x68] sm:$0xf]
    %v68 = vld [vmem:[%s0 + $0x6c] sm:$0xf]
    %v69 = vld [vmem:[%s0 + $0x70] sm:$0xf]
    %v70 = vld [vmem:[%s0 + $0x74] sm:$0xf]
    %v71 = vld [vmem:[%s0 + $0x78] sm:$0xf]
    %v72 = vld [vmem:[%s0 + $0x7c] sm:$0xf]
    %v73 = vld [vmem:[%s2] sm:$0xf]
    %v74 = vld [vmem:[%s2 + $0x4] sm:$0xf]
    %v75 = vld [vmem:[%s2 + $0x8] sm:$0xf]
    %v76 = vld [vmem:[%s2 + $0xc] sm:$0xf]
    %v77 = vlaneseq
    %v78 = vshrl.u32 %v77, 7
    %v79 = vsub.s32 0, %v78
    %v80 = vrot.slane %v40, %v79
    %v113 = vunpack.c.l.b16 %v41
    %v114 = vunpack.c.l.b16 %v42
    %v115 = vunpack.c.l.b16 %v43
    %v116 = vunpack.c.l.b16 %v44
    %v117 = vunpack.c.l.b16 %v45
    %v118 = vunpack.c.l.b16 %v46
    %v119 = vunpack.c.l.b16 %v47
    %v120 = vunpack.c.l.b16 %v48
    %v121 = vunpack.c.l.b16 %v49
    %v122 = vunpack.c.l.b16 %v50
    %v123 = vunpack.c.l.b16 %v51
    %v124 = vunpack.c.l.b16 %v52
    %v125 = vunpack.c.l.b16 %v53
    %v126 = vunpack.c.l.b16 %v54
    %v127 = vunpack.c.l.b16 %v55
    %v128 = vunpack.c.l.b16 %v56
    %v129 = vunpack.c.l.b16 %v57
    %v130 = vunpack.c.l.b16 %v58
    %v131 = vunpack.c.l.b16 %v59
    %v132 = vunpack.c.l.b16 %v60
    %v133 = vunpack.c.l.b16 %v61
    %v134 = vunpack.c.l.b16 %v62
    %v135 = vunpack.c.l.b16 %v63
    %v136 = vunpack.c.l.b16 %v64
    %v137 = vunpack.c.l.b16 %v65
    %v138 = vunpack.c.l.b16 %v66
    %v139 = vunpack.c.l.b16 %v67
    %v140 = vunpack.c.l.b16 %v68
    %v141 = vunpack.c.l.b16 %v69
    %v142 = vunpack.c.l.b16 %v70
    %v143 = vunpack.c.l.b16 %v71
    %v144 = vunpack.c.l.b16 %v72
    %v145 = vpack.c.b16 %v114, %v113
    %v146 = vpack.c.b16 %v116, %v115
    %v147 = vpack.c.b16 %v118, %v117
    %v148 = vpack.c.b16 %v120, %v119
    %v149 = vpack.c.b16 %v122, %v121
    %v150 = vpack.c.b16 %v124, %v123
    %v151 = vpack.c.b16 %v126, %v125
    %v152 = vpack.c.b16 %v128, %v127
    %v153 = vpack.c.b16 %v130, %v129
    %v154 = vpack.c.b16 %v132, %v131
    %v155 = vpack.c.b16 %v134, %v133
    %v156 = vpack.c.b16 %v136, %v135
    %v157 = vpack.c.b16 %v138, %v137
    %v158 = vpack.c.b16 %v140, %v139
    %v159 = vpack.c.b16 %v142, %v141
    %v160 = vpack.c.b16 %v144, %v143
    %v165 = vunpack.c.l.b16 %v73
    %v166 = vunpack.c.l.b16 %v74
    %v167 = vunpack.c.l.b16 %v75
    %v168 = vunpack.c.l.b16 %v76
    %v169 = vpack.c.b16 %v166, %v165
    %v170 = vpack.c.b16 %v168, %v167
    %vm173 = vcmask 261120
    %v175 = vsel %vm173, %v145, 0
    %v178 = vsel %vm173, %v146, 0
    %v181 = vsel %vm173, %v147, 0
    %v184 = vsel %vm173, %v148, 0
    %v187 = vsel %vm173, %v149, 0
    %v190 = vsel %vm173, %v150, 0
    %v193 = vsel %vm173, %v151, 0
    %v196 = vsel %vm173, %v152, 0
    %v199 = vsel %vm173, %v153, 0
    %v202 = vsel %vm173, %v154, 0
    %v205 = vsel %vm173, %v155, 0
    %v208 = vsel %vm173, %v156, 0
    %v211 = vsel %vm173, %v157, 0
    %v214 = vsel %vm173, %v158, 0
    %v217 = vsel %vm173, %v159, 0
    %v220 = vsel %vm173, %v160, 0
    %222 = vmatprep.subr.bf16.mxu0 0
    %223 = vmatpush1.bf16.msra.mxu0 %v169
    %224 = vmatprep.subr.bf16.mxu0 0
    %225 = vmatpush1.bf16.msra.mxu0 %v170
    %226 = vmatprep.subr.bf16.mxu0 0
    %227 = vmatpush1.bf16.msra.mxu0 0
    %228 = vmatprep.subr.bf16.mxu0 0
    %229 = vmatpush1.bf16.msra.mxu0 0
    %230 = vmatprep.subr.bf16.mxu0 0
    %231 = vmatpush1.bf16.msra.mxu0 0
    %232 = vmatprep.subr.bf16.mxu0 0
    %233 = vmatpush1.bf16.msra.mxu0 0
    %234 = vmatprep.subr.bf16.mxu0 0
    %235 = vmatpush1.bf16.msra.mxu0 0
    %236 = vmatprep.subr.bf16.mxu0 0
    %237 = vmatpush1.bf16.msra.mxu0 0
    %238 = vmatprep.subr.bf16.mxu0 0
    %239 = vmatpush1.bf16.msra.mxu0 0
    %240 = vmatprep.subr.bf16.mxu0 0
    %241 = vmatpush1.bf16.msra.mxu0 0
    %242 = vmatprep.subr.bf16.mxu0 0
    %243 = vmatpush1.bf16.msra.mxu0 0
    %244 = vmatprep.subr.bf16.mxu0 0
    %245 = vmatpush1.bf16.msra.mxu0 0
    %246 = vmatprep.subr.bf16.mxu0 0
    %247 = vmatpush1.bf16.msra.mxu0 0
    %248 = vmatprep.subr.bf16.mxu0 0
    %249 = vmatpush1.bf16.msra.mxu0 0
    %250 = vmatprep.subr.bf16.mxu0 0
    %251 = vmatpush1.bf16.msra.mxu0 0
    %252 = vmatprep.subr.bf16.mxu0 0
    %253 = vmatpush1.bf16.msra.mxu0 0
    %254 = vmatprep.mubr.bf16.mxu0 0
    %255 = vmatmul.mubr.bf16.gmra.mrb[0].mxu0 %v175
    %v256 = vpop.f32.mrb[0].mxu0
    %v257 = vadd.f32 %v80, %v256
    %v258 = vpop.f32.mrb[0].mxu0
    %v259 = vpop.f32.mrb[0].mxu0
    %v260 = vadd.f32 %v80, %v259
    %v261 = vpop.f32.mrb[0].mxu0
    %262 = vmatprep.mubr.bf16.mxu0 0
    %263 = vmatmul.mubr.bf16.gmra.mrb[0].mxu0 %v178
    %v264 = vpop.f32.mrb[0].mxu0
    %v265 = vadd.f32 %v80, %v264
    %v266 = vpop.f32.mrb[0].mxu0
    %v267 = vpop.f32.mrb[0].mxu0
    %v268 = vadd.f32 %v80, %v267
    %v269 = vpop.f32.mrb[0].mxu0
    %270 = vmatprep.mubr.bf16.mxu0 0
    %271 = vmatmul.mubr.bf16.gmra.mrb[0].mxu0 %v181
    %v272 = vpop.f32.mrb[0].mxu0
    %v273 = vadd.f32 %v80, %v272
    %v274 = vpop.f32.mrb[0].mxu0
    %v275 = vpop.f32.mrb[0].mxu0
    %v276 = vadd.f32 %v80, %v275
    %v277 = vpop.f32.mrb[0].mxu0
    %278 = vmatprep.mubr.bf16.mxu0 0
    %279 = vmatmul.mubr.bf16.gmra.mrb[0].mxu0 %v184
    %v280 = vpop.f32.mrb[0].mxu0
    %v281 = vadd.f32 %v80, %v280
    %v282 = vpop.f32.mrb[0].mxu0
    %v283 = vpop.f32.mrb[0].mxu0
    %v284 = vadd.f32 %v80, %v283
    %v285 = vpop.f32.mrb[0].mxu0
    %286 = vmatprep.mubr.bf16.mxu0 0
    %287 = vmatmul.mubr.bf16.gmra.mrb[0].mxu0 %v187
    %v288 = vpop.f32.mrb[0].mxu0
    %v289 = vadd.f32 %v80, %v288
    %v290 = vpop.f32.mrb[0].mxu0
    %v291 = vpop.f32.mrb[0].mxu0
    %v292 = vadd.f32 %v80, %v291
    %v293 = vpop.f32.mrb[0].mxu0
    %294 = vmatprep.mubr.bf16.mxu0 0
    %295 = vmatmul.mubr.bf16.gmra.mrb[0].mxu0 %v190
    %v296 = vpop.f32.mrb[0].mxu0
    %v297 = vadd.f32 %v80, %v296
    %v298 = vpop.f32.mrb[0].mxu0
    %v299 = vpop.f32.mrb[0].mxu0
    %v300 = vadd.f32 %v80, %v299
    %v301 = vpop.f32.mrb[0].mxu0
    %302 = vmatprep.mubr.bf16.mxu0 0
    %303 = vmatmul.mubr.bf16.gmra.mrb[0].mxu0 %v193
    %v304 = vpop.f32.mrb[0].mxu0
    %v305 = vadd.f32 %v80, %v304
    %v306 = vpop.f32.mrb[0].mxu0
    %v307 = vpop.f32.mrb[0].mxu0
    %v308 = vadd.f32 %v80, %v307
    %v309 = vpop.f32.mrb[0].mxu0
    %310 = vmatprep.mubr.bf16.mxu0 0
    %311 = vmatmul.mubr.bf16.gmra.mrb[0].mxu0 %v196
    %v312 = vpop.f32.mrb[0].mxu0
    %v313 = vadd.f32 %v80, %v312
    %v314 = vpop.f32.mrb[0].mxu0
    %v315 = vpop.f32.mrb[0].mxu0
    %v316 = vadd.f32 %v80, %v315
    %v317 = vpop.f32.mrb[0].mxu0
    %318 = vmatprep.mubr.bf16.mxu0 0
    %319 = vmatmul.mubr.bf16.gmra.mrb[0].mxu0 %v199
    %v320 = vpop.f32.mrb[0].mxu0
    %v321 = vadd.f32 %v80, %v320
    %v322 = vpop.f32.mrb[0].mxu0
    %v323 = vpop.f32.mrb[0].mxu0
    %v324 = vadd.f32 %v80, %v323
    %v325 = vpop.f32.mrb[0].mxu0
    %326 = vmatprep.mubr.bf16.mxu0 0
    %327 = vmatmul.mubr.bf16.gmra.mrb[0].mxu0 %v202
    %v328 = vpop.f32.mrb[0].mxu0
    %v329 = vadd.f32 %v80, %v328
    %v330 = vpop.f32.mrb[0].mxu0
    %v331 = vpop.f32.mrb[0].mxu0
    %v332 = vadd.f32 %v80, %v331
    %v333 = vpop.f32.mrb[0].mxu0
    %334 = vmatprep.mubr.bf16.mxu0 0
    %335 = vmatmul.mubr.bf16.gmra.mrb[0].mxu0 %v205
    %v336 = vpop.f32.mrb[0].mxu0
    %v337 = vadd.f32 %v80, %v336
    %v338 = vpop.f32.mrb[0].mxu0
    %v339 = vpop.f32.mrb[0].mxu0
    %v340 = vadd.f32 %v80, %v339
    %v341 = vpop.f32.mrb[0].mxu0
    %342 = vmatprep.mubr.bf16.mxu0 0
    %343 = vmatmul.mubr.bf16.gmra.mrb[0].mxu0 %v208
    %v344 = vpop.f32.mrb[0].mxu0
    %v345 = vadd.f32 %v80, %v344
    %v346 = vpop.f32.mrb[0].mxu0
    %v347 = vpop.f32.mrb[0].mxu0
    %v348 = vadd.f32 %v80, %v347
    %v349 = vpop.f32.mrb[0].mxu0
    %350 = vmatprep.mubr.bf16.mxu0 0
    %351 = vmatmul.mubr.bf16.gmra.mrb[0].mxu0 %v211
    %v352 = vpop.f32.mrb[0].mxu0
    %v353 = vadd.f32 %v80, %v352
    %v354 = vpop.f32.mrb[0].mxu0
    %v355 = vpop.f32.mrb[0].mxu0
    %v356 = vadd.f32 %v80, %v355
    %v357 = vpop.f32.mrb[0].mxu0
    %358 = vmatprep.mubr.bf16.mxu0 0
    %359 = vmatmul.mubr.bf16.gmra.mrb[0].mxu0 %v214
    %v360 = vpop.f32.mrb[0].mxu0
    %v361 = vadd.f32 %v80, %v360
    %v362 = vpop.f32.mrb[0].mxu0
    %v363 = vpop.f32.mrb[0].mxu0
    %v364 = vadd.f32 %v80, %v363
    %v365 = vpop.f32.mrb[0].mxu0
    %366 = vmatprep.mubr.bf16.mxu0 0
    %367 = vmatmul.mubr.bf16.gmra.mrb[0].mxu0 %v217
    %v368 = vpop.f32.mrb[0].mxu0
    %v369 = vadd.f32 %v80, %v368
    %v370 = vpop.f32.mrb[0].mxu0
    %v371 = vpop.f32.mrb[0].mxu0
    %v372 = vadd.f32 %v80, %v371
    %v373 = vpop.f32.mrb[0].mxu0
    %374 = vmatprep.mubr.bf16.mxu0 0
    %375 = vmatmul.mubr.bf16.gmra.mrb[0].mxu0 %v220
    %v376 = vpop.f32.mrb[0].mxu0
    %v377 = vadd.f32 %v80, %v376
    %v378 = vpop.f32.mrb[0].mxu0
    %v379 = vpop.f32.mrb[0].mxu0
    %v380 = vadd.f32 %v80, %v379
    %v381 = vpop.f32.mrb[0].mxu0
    %382 = vdwg.mxu0
    %v383 = vmax.f32 %v257, 0.0
    %v384 = vmax.f32 %v260, 0.0
    %v385 = vmax.f32 %v265, 0.0
    %v386 = vmax.f32 %v268, 0.0
    %v387 = vmax.f32 %v273, 0.0
    %v388 = vmax.f32 %v276, 0.0
    %v389 = vmax.f32 %v281, 0.0
    %v390 = vmax.f32 %v284, 0.0
    %v391 = vmax.f32 %v289, 0.0
    %v392 = vmax.f32 %v292, 0.0
    %v393 = vmax.f32 %v297, 0.0
    %v394 = vmax.f32 %v300, 0.0
    %v395 = vmax.f32 %v305, 0.0
    %v396 = vmax.f32 %v308, 0.0
    %v397 = vmax.f32 %v313, 0.0
    %v398 = vmax.f32 %v316, 0.0
    %v399 = vmax.f32 %v321, 0.0
    %v400 = vmax.f32 %v324, 0.0
    %v401 = vmax.f32 %v329, 0.0
    %v402 = vmax.f32 %v332, 0.0
    %v403 = vmax.f32 %v337, 0.0
    %v404 = vmax.f32 %v340, 0.0
    %v405 = vmax.f32 %v345, 0.0
    %v406 = vmax.f32 %v348, 0.0
    %v407 = vmax.f32 %v353, 0.0
    %v408 = vmax.f32 %v356, 0.0
    %v409 = vmax.f32 %v361, 0.0
    %v410 = vmax.f32 %v364, 0.0
    %v411 = vmax.f32 %v369, 0.0
    %v412 = vmax.f32 %v372, 0.0
    %v413 = vmax.f32 %v377, 0.0
    %v414 = vmax.f32 %v380, 0.0
    %v415 = vld [vmem:[#allocation2] sm:$0x1]
    %416 = vmatprep.subr.mxu0 0.0
    %417 = vmatpush1.msra.mxu0 %v383
    %418 = vmatprep.subr.mxu0 0.0
    %419 = vmatpush1.msra.mxu0 %v384
    %420 = vmatprep.subr.mxu0 0.0
    %421 = vmatpush1.msra.mxu0 %v385
    %422 = vmatprep.subr.mxu0 0.0
    %423 = vmatpush1.msra.mxu0 %v386
    %424 = vmatprep.subr.mxu0 0.0
    %425 = vmatpush1.msra.mxu0 %v387
    %426 = vmatprep.subr.mxu0 0.0
    %427 = vmatpush1.msra.mxu0 %v388
    %428 = vmatprep.subr.mxu0 0.0
    %429 = vmatpush1.msra.mxu0 %v389
    %430 = vmatprep.subr.mxu0 0.0
    %431 = vmatpush1.msra.mxu0 %v390
    %432 = vmatprep.subr.mxu0 0.0
    %433 = vmatpush1.msra.mxu0 %v391
    %434 = vmatprep.subr.mxu0 0.0
    %435 = vmatpush1.msra.mxu0 %v392
    %436 = vmatprep.subr.mxu0 0.0
    %437 = vmatpush1.msra.mxu0 %v393
    %438 = vmatprep.subr.mxu0 0.0
    %439 = vmatpush1.msra.mxu0 %v394
    %440 = vmatprep.subr.mxu0 0.0
    %441 = vmatpush1.msra.mxu0 %v395
    %442 = vmatprep.subr.mxu0 0.0
    %443 = vmatpush1.msra.mxu0 %v396
    %444 = vmatprep.subr.mxu0 0.0
    %445 = vmatpush1.msra.mxu0 %v397
    %446 = vmatprep.subr.mxu0 0.0
    %447 = vmatpush1.msra.mxu0 %v398
    %448 = vmatprep.subr.mxu0 0.0
    %449 = vmatpush1.msra.mxu0 %v399
    %450 = vmatprep.subr.mxu0 0.0
    %451 = vmatpush1.msra.mxu0 %v400
    %452 = vmatprep.subr.mxu0 0.0
    %453 = vmatpush1.msra.mxu0 %v401
    %454 = vmatprep.subr.mxu0 0.0
    %455 = vmatpush1.msra.mxu0 %v402
    %456 = vmatprep.subr.mxu0 0.0
    %457 = vmatpush1.msra.mxu0 %v403
    %458 = vmatprep.subr.mxu0 0.0
    %459 = vmatpush1.msra.mxu0 %v404
    %460 = vmatprep.subr.mxu0 0.0
    %461 = vmatpush1.msra.mxu0 %v405
    %462 = vmatprep.subr.mxu0 0.0
    %463 = vmatpush1.msra.mxu0 %v406
    %464 = vmatprep.subr.mxu0 0.0
    %465 = vmatpush1.msra.mxu0 %v407
    %466 = vmatprep.subr.mxu0 0.0
    %467 = vmatpush1.msra.mxu0 %v408
    %468 = vmatprep.subr.mxu0 0.0
    %469 = vmatpush1.msra.mxu0 %v409
    %470 = vmatprep.subr.mxu0 0.0
    %471 = vmatpush1.msra.mxu0 %v410
    %472 = vmatprep.subr.mxu0 0.0
    %473 = vmatpush1.msra.mxu0 %v411
    %474 = vmatprep.subr.mxu0 0.0
    %475 = vmatpush1.msra.mxu0 %v412
    %476 = vmatprep.subr.mxu0 0.0
    %477 = vmatpush1.msra.mxu0 %v413
    %478 = vmatprep.subr.mxu0 0.0
    %479 = vmatpush1.msra.mxu0 %v414
    %480 = vmatprep.mubr.f32.mxu0 %v39
    %481 = vmatmul.mubr.f32.gmra.mrb[0].mxu0 %v38
    %v482 = vpop.f32.mrb[0].mxu0
    %v483 = vadd.f32 0.0, %v482
    %v484 = vpop.f32.mrb[0].mxu0
    %485 = vdwg.mxu0
    %v486 = vadd.f32 %v415, %v483
    %487 = vst [vmem:[#allocation2] sm:$0x1] %v486
    %s488 = scalar_lea.vmem %s0, 128
    %v489 = vld [vmem:[%s488] sm:$0xf]
    %v490 = vld [vmem:[%s488 + $0x4] sm:$0xf]
    %v491 = vld [vmem:[%s488 + $0x8] sm:$0xf]
    %v492 = vld [vmem:[%s488 + $0xc] sm:$0xf]
    %v493 = vld [vmem:[%s488 + $0x10] sm:$0xf]
    %v494 = vld [vmem:[%s488 + $0x14] sm:$0xf]
    %v495 = vld [vmem:[%s488 + $0x18] sm:$0xf]
    %v496 = vld [vmem:[%s488 + $0x1c] sm:$0xf]
    %v497 = vld [vmem:[%s488 + $0x20] sm:$0xf]
    %v498 = vld [vmem:[%s488 + $0x24] sm:$0xf]
    %v499 = vld [vmem:[%s488 + $0x28] sm:$0xf]
    %v500 = vld [vmem:[%s488 + $0x2c] sm:$0xf]
    %v501 = vld [vmem:[%s488 + $0x30] sm:$0xf]
    %v502 = vld [vmem:[%s488 + $0x34] sm:$0xf]
    %v503 = vld [vmem:[%s488 + $0x38] sm:$0xf]
    %v504 = vld [vmem:[%s488 + $0x3c] sm:$0xf]
    %v505 = vld [vmem:[%s488 + $0x40] sm:$0xf]
    %v506 = vld [vmem:[%s488 + $0x44] sm:$0xf]
    %v507 = vld [vmem:[%s488 + $0x48] sm:$0xf]
    %v508 = vld [vmem:[%s488 + $0x4c] sm:$0xf]
    %v509 = vld [vmem:[%s488 + $0x50] sm:$0xf]
    %v510 = vld [vmem:[%s488 + $0x54] sm:$0xf]
    %v511 = vld [vmem:[%s488 + $0x58] sm:$0xf]
    %v512 = vld [vmem:[%s488 + $0x5c] sm:$0xf]
    %v513 = vld [vmem:[%s488 + $0x60] sm:$0xf]
    %v514 = vld [vmem:[%s488 + $0x64] sm:$0xf]
    %v515 = vld [vmem:[%s488 + $0x68] sm:$0xf]
    %v516 = vld [vmem:[%s488 + $0x6c] sm:$0xf]
    %v517 = vld [vmem:[%s488 + $0x70] sm:$0xf]
    %v518 = vld [vmem:[%s488 + $0x74] sm:$0xf]
    %v519 = vld [vmem:[%s488 + $0x78] sm:$0xf]
    %v520 = vld [vmem:[%s488 + $0x7c] sm:$0xf]
    %v521 = vld [vmem:[%s2] sm:$0xf]
    %v522 = vld [vmem:[%s2 + $0x4] sm:$0xf]
    %v523 = vld [vmem:[%s2 + $0x8] sm:$0xf]
    %v524 = vld [vmem:[%s2 + $0xc] sm:$0xf]
    %v557 = vunpack.c.l.b16 %v489
    %v558 = vunpack.c.l.b16 %v490
    %v559 = vunpack.c.l.b16 %v491
    %v560 = vunpack.c.l.b16 %v492
    %v561 = vunpack.c.l.b16 %v493
    %v562 = vunpack.c.l.b16 %v494
    %v563 = vunpack.c.l.b16 %v495
    %v564 = vunpack.c.l.b16 %v496
    %v565 = vunpack.c.l.b16 %v497
    %v566 = vunpack.c.l.b16 %v498
    %v567 = vunpack.c.l.b16 %v499
    %v568 = vunpack.c.l.b16 %v500
    %v569 = vunpack.c.l.b16 %v501
    %v570 = vunpack.c.l.b16 %v502
    %v571 = vunpack.c.l.b16 %v503
    %v572 = vunpack.c.l.b16 %v504
    %v573 = vunpack.c.l.b16 %v505
    %v574 = vunpack.c.l.b16 %v506
    %v575 = vunpack.c.l.b16 %v507
    %v576 = vunpack.c.l.b16 %v508
    %v577 = vunpack.c.l.b16 %v509
    %v578 = vunpack.c.l.b16 %v510
    %v579 = vunpack.c.l.b16 %v511
    %v580 = vunpack.c.l.b16 %v512
    %v581 = vunpack.c.l.b16 %v513
    %v582 = vunpack.c.l.b16 %v514
    %v583 = vunpack.c.l.b16 %v515
    %v584 = vunpack.c.l.b16 %v516
    %v585 = vunpack.c.l.b16 %v517
    %v586 = vunpack.c.l.b16 %v518
    %v587 = vunpack.c.l.b16 %v519
    %v588 = vunpack.c.l.b16 %v520
    %v589 = vpack.c.b16 %v558, %v557
    %v590 = vpack.c.b16 %v560, %v559
    %v591 = vpack.c.b16 %v562, %v561
    %v592 = vpack.c.b16 %v564, %v563
    %v593 = vpack.c.b16 %v566, %v565
    %v594 = vpack.c.b16 %v568, %v567
    %v595 = vpack.c.b16 %v570, %v569
    %v596 = vpack.c.b16 %v572, %v571
    %v597 = vpack.c.b16 %v574, %v573
    %v598 = vpack.c.b16 %v576, %v575
    %v599 = vpack.c.b16 %v578, %v577
    %v600 = vpack.c.b16 %v580, %v579
    %v601 = vpack.c.b16 %v582, %v581
    %v602 = vpack.c.b16 %v584, %v583
    %v603 = vpack.c.b16 %v586, %v585
    %v604 = vpack.c.b16 %v588, %v587
    %v609 = vunpack.c.l.b16 %v521
    %v610 = vunpack.c.l.b16 %v522
    %v611 = vunpack.c.l.b16 %v523
    %v612 = vunpack.c.l.b16 %v524
    %v613 = vpack.c.b16 %v610, %v609
    %v614 = vpack.c.b16 %v612, %v611
    %v618 = vsel %vm173, %v589, 0
    %v621 = vsel %vm173, %v590, 0
    %v624 = vsel %vm173, %v591, 0
    %v627 = vsel %vm173, %v592, 0
    %v630 = vsel %vm173, %v593, 0
    %v633 = vsel %vm173, %v594, 0
    %v636 = vsel %vm173, %v595, 0
    %v639 = vsel %vm173, %v596, 0
    %v642 = vsel %vm173, %v597, 0
    %v645 = vsel %vm173, %v598, 0
    %v648 = vsel %vm173, %v599, 0
    %v651 = vsel %vm173, %v600, 0
    %v654 = vsel %vm173, %v601, 0
    %v657 = vsel %vm173, %v602, 0
    %v660 = vsel %vm173, %v603, 0
    %v663 = vsel %vm173, %v604, 0
    %665 = vmatprep.subr.bf16.mxu0 0
    %666 = vmatpush1.bf16.msra.mxu0 %v613
    %667 = vmatprep.subr.bf16.mxu0 0
    %668 = vmatpush1.bf16.msra.mxu0 %v614
    %669 = vmatprep.subr.bf16.mxu0 0
    %670 = vmatpush1.bf16.msra.mxu0 0
    %671 = vmatprep.subr.bf16.mxu0 0
    %672 = vmatpush1.bf16.msra.mxu0 0
    %673 = vmatprep.subr.bf16.mxu0 0
    %674 = vmatpush1.bf16.msra.mxu0 0
    %675 = vmatprep.subr.bf16.mxu0 0
    %676 = vmatpush1.bf16.msra.mxu0 0
    %677 = vmatprep.subr.bf16.mxu0 0
    %678 = vmatpush1.bf16.msra.mxu0 0
    %679 = vmatprep.subr.bf16.mxu0 0
    %680 = vmatpush1.bf16.msra.mxu0 0
    %681 = vmatprep.subr.bf16.mxu0 0
    %682 = vmatpush1.bf16.msra.mxu0 0
    %683 = vmatprep.subr.bf16.mxu0 0
    %684 = vmatpush1.bf16.msra.mxu0 0
    %685 = vmatprep.subr.bf16.mxu0 0
    %686 = vmatpush1.bf16.msra.mxu0 0
    %687 = vmatprep.subr.bf16.mxu0 0
    %688 = vmatpush1.bf16.msra.mxu0 0
    %689 = vmatprep.subr.bf16.mxu0 0
    %690 = vmatpush1.bf16.msra.mxu0 0
    %691 = vmatprep.subr.bf16.mxu0 0
    %692 = vmatpush1.bf16.msra.mxu0 0
    %693 = vmatprep.subr.bf16.mxu0 0
    %694 = vmatpush1.bf16.msra.mxu0 0
    %695 = vmatprep.subr.bf16.mxu0 0
    %696 = vmatpush1.bf16.msra.mxu0 0
    %697 = vmatprep.mubr.bf16.mxu0 0
    %698 = vmatmul.mubr.bf16.gmra.mrb[0].mxu0 %v618
    %v699 = vpop.f32.mrb[0].mxu0
    %v700 = vadd.f32 %v80, %v699
    %v701 = vpop.f32.mrb[0].mxu0
    %v702 = vpop.f32.mrb[0].mxu0
    %v703 = vadd.f32 %v80, %v702
    %v704 = vpop.f32.mrb[0].mxu0
    %705 = vmatprep.mubr.bf16.mxu0 0
    %706 = vmatmul.mubr.bf16.gmra.mrb[0].mxu0 %v621
    %v707 = vpop.f32.mrb[0].mxu0
    %v708 = vadd.f32 %v80, %v707
    %v709 = vpop.f32.mrb[0].mxu0
    %v710 = vpop.f32.mrb[0].mxu0
    %v711 = vadd.f32 %v80, %v710
    %v712 = vpop.f32.mrb[0].mxu0
    %713 = vmatprep.mubr.bf16.mxu0 0
    %714 = vmatmul.mubr.bf16.gmra.mrb[0].mxu0 %v624
    %v715 = vpop.f32.mrb[0].mxu0
    %v716 = vadd.f32 %v80, %v715
    %v717 = vpop.f32.mrb[0].mxu0
    %v718 = vpop.f32.mrb[0].mxu0
    %v719 = vadd.f32 %v80, %v718
    %v720 = vpop.f32.mrb[0].mxu0
    %721 = vmatprep.mubr.bf16.mxu0 0
    %722 = vmatmul.mubr.bf16.gmra.mrb[0].mxu0 %v627
    %v723 = vpop.f32.mrb[0].mxu0
    %v724 = vadd.f32 %v80, %v723
    %v725 = vpop.f32.mrb[0].mxu0
    %v726 = vpop.f32.mrb[0].mxu0
    %v727 = vadd.f32 %v80, %v726
    %v728 = vpop.f32.mrb[0].mxu0
    %729 = vmatprep.mubr.bf16.mxu0 0
    %730 = vmatmul.mubr.bf16.gmra.mrb[0].mxu0 %v630
    %v731 = vpop.f32.mrb[0].mxu0
    %v732 = vadd.f32 %v80, %v731
    %v733 = vpop.f32.mrb[0].mxu0
    %v734 = vpop.f32.mrb[0].mxu0
    %v735 = vadd.f32 %v80, %v734
    %v736 = vpop.f32.mrb[0].mxu0
    %737 = vmatprep.mubr.bf16.mxu0 0
    %738 = vmatmul.mubr.bf16.gmra.mrb[0].mxu0 %v633
    %v739 = vpop.f32.mrb[0].mxu0
    %v740 = vadd.f32 %v80, %v739
    %v741 = vpop.f32.mrb[0].mxu0
    %v742 = vpop.f32.mrb[0].mxu0
    %v743 = vadd.f32 %v80, %v742
    %v744 = vpop.f32.mrb[0].mxu0
    %745 = vmatprep.mubr.bf16.mxu0 0
    %746 = vmatmul.mubr.bf16.gmra.mrb[0].mxu0 %v636
    %v747 = vpop.f32.mrb[0].mxu0
    %v748 = vadd.f32 %v80, %v747
    %v749 = vpop.f32.mrb[0].mxu0
    %v750 = vpop.f32.mrb[0].mxu0
    %v751 = vadd.f32 %v80, %v750
    %v752 = vpop.f32.mrb[0].mxu0
    %753 = vmatprep.mubr.bf16.mxu0 0
    %754 = vmatmul.mubr.bf16.gmra.mrb[0].mxu0 %v639
    %v755 = vpop.f32.mrb[0].mxu0
    %v756 = vadd.f32 %v80, %v755
    %v757 = vpop.f32.mrb[0].mxu0
    %v758 = vpop.f32.mrb[0].mxu0
    %v759 = vadd.f32 %v80, %v758
    %v760 = vpop.f32.mrb[0].mxu0
    %761 = vmatprep.mubr.bf16.mxu0 0
    %762 = vmatmul.mubr.bf16.gmra.mrb[0].mxu0 %v642
    %v763 = vpop.f32.mrb[0].mxu0
    %v764 = vadd.f32 %v80, %v763
    %v765 = vpop.f32.mrb[0].mxu0
    %v766 = vpop.f32.mrb[0].mxu0
    %v767 = vadd.f32 %v80, %v766
    %v768 = vpop.f32.mrb[0].mxu0
    %769 = vmatprep.mubr.bf16.mxu0 0
    %770 = vmatmul.mubr.bf16.gmra.mrb[0].mxu0 %v645
    %v771 = vpop.f32.mrb[0].mxu0
    %v772 = vadd.f32 %v80, %v771
    %v773 = vpop.f32.mrb[0].mxu0
    %v774 = vpop.f32.mrb[0].mxu0
    %v775 = vadd.f32 %v80, %v774
    %v776 = vpop.f32.mrb[0].mxu0
    %777 = vmatprep.mubr.bf16.mxu0 0
    %778 = vmatmul.mubr.bf16.gmra.mrb[0].mxu0 %v648
    %v779 = vpop.f32.mrb[0].mxu0
    %v780 = vadd.f32 %v80, %v779
    %v781 = vpop.f32.mrb[0].mxu0
    %v782 = vpop.f32.mrb[0].mxu0
    %v783 = vadd.f32 %v80, %v782
    %v784 = vpop.f32.mrb[0].mxu0
    %785 = vmatprep.mubr.bf16.mxu0 0
    %786 = vmatmul.mubr.bf16.gmra.mrb[0].mxu0 %v651
    %v787 = vpop.f32.mrb[0].mxu0
    %v788 = vadd.f32 %v80, %v787
    %v789 = vpop.f32.mrb[0].mxu0
    %v790 = vpop.f32.mrb[0].mxu0
    %v791 = vadd.f32 %v80, %v790
    %v792 = vpop.f32.mrb[0].mxu0
    %793 = vmatprep.mubr.bf16.mxu0 0
    %794 = vmatmul.mubr.bf16.gmra.mrb[0].mxu0 %v654
    %v795 = vpop.f32.mrb[0].mxu0
    %v796 = vadd.f32 %v80, %v795
    %v797 = vpop.f32.mrb[0].mxu0
    %v798 = vpop.f32.mrb[0].mxu0
    %v799 = vadd.f32 %v80, %v798
    %v800 = vpop.f32.mrb[0].mxu0
    %801 = vmatprep.mubr.bf16.mxu0 0
    %802 = vmatmul.mubr.bf16.gmra.mrb[0].mxu0 %v657
    %v803 = vpop.f32.mrb[0].mxu0
    %v804 = vadd.f32 %v80, %v803
    %v805 = vpop.f32.mrb[0].mxu0
    %v806 = vpop.f32.mrb[0].mxu0
    %v807 = vadd.f32 %v80, %v806
    %v808 = vpop.f32.mrb[0].mxu0
    %809 = vmatprep.mubr.bf16.mxu0 0
    %810 = vmatmul.mubr.bf16.gmra.mrb[0].mxu0 %v660
    %v811 = vpop.f32.mrb[0].mxu0
    %v812 = vadd.f32 %v80, %v811
    %v813 = vpop.f32.mrb[0].mxu0
    %v814 = vpop.f32.mrb[0].mxu0
    %v815 = vadd.f32 %v80, %v814
    %v816 = vpop.f32.mrb[0].mxu0
    %817 = vmatprep.mubr.bf16.mxu0 0
    %818 = vmatmul.mubr.bf16.gmra.mrb[0].mxu0 %v663
    %v819 = vpop.f32.mrb[0].mxu0
    %v820 = vadd.f32 %v80, %v819
    %v821 = vpop.f32.mrb[0].mxu0
    %v822 = vpop.f32.mrb[0].mxu0
    %v823 = vadd.f32 %v80, %v822
    %v824 = vpop.f32.mrb[0].mxu0
    %825 = vdwg.mxu0
    %v826 = vmax.f32 %v700, 0.0
    %v827 = vmax.f32 %v703, 0.0
    %v828 = vmax.f32 %v708, 0.0
    %v829 = vmax.f32 %v711, 0.0
    %v830 = vmax.f32 %v716, 0.0
    %v831 = vmax.f32 %v719, 0.0
    %v832 = vmax.f32 %v724, 0.0
    %v833 = vmax.f32 %v727, 0.0
    %v834 = vmax.f32 %v732, 0.0
    %v835 = vmax.f32 %v735, 0.0
    %v836 = vmax.f32 %v740, 0.0
    %v837 = vmax.f32 %v743, 0.0
    %v838 = vmax.f32 %v748, 0.0
    %v839 = vmax.f32 %v751, 0.0
    %v840 = vmax.f32 %v756, 0.0
    %v841 = vmax.f32 %v759, 0.0
    %v842 = vmax.f32 %v764, 0.0
    %v843 = vmax.f32 %v767, 0.0
    %v844 = vmax.f32 %v772, 0.0
    %v845 = vmax.f32 %v775, 0.0
    %v846 = vmax.f32 %v780, 0.0
    %v847 = vmax.f32 %v783, 0.0
    %v848 = vmax.f32 %v788, 0.0
    %v849 = vmax.f32 %v791, 0.0
    %v850 = vmax.f32 %v796, 0.0
    %v851 = vmax.f32 %v799, 0.0
    %v852 = vmax.f32 %v804, 0.0
    %v853 = vmax.f32 %v807, 0.0
    %v854 = vmax.f32 %v812, 0.0
    %v855 = vmax.f32 %v815, 0.0
    %v856 = vmax.f32 %v820, 0.0
    %v857 = vmax.f32 %v823, 0.0
    %v858 = vld [vmem:[#allocation2 + $0x1] sm:$0x1]
    %859 = vmatprep.subr.mxu0 0.0
    %860 = vmatpush1.msra.mxu0 %v826
    %861 = vmatprep.subr.mxu0 0.0
    %862 = vmatpush1.msra.mxu0 %v827
    %863 = vmatprep.subr.mxu0 0.0
    %864 = vmatpush1.msra.mxu0 %v828
    %865 = vmatprep.subr.mxu0 0.0
    %866 = vmatpush1.msra.mxu0 %v829
    %867 = vmatprep.subr.mxu0 0.0
    %868 = vmatpush1.msra.mxu0 %v830
    %869 = vmatprep.subr.mxu0 0.0
    %870 = vmatpush1.msra.mxu0 %v831
    %871 = vmatprep.subr.mxu0 0.0
    %872 = vmatpush1.msra.mxu0 %v832
    %873 = vmatprep.subr.mxu0 0.0
    %874 = vmatpush1.msra.mxu0 %v833
    %875 = vmatprep.subr.mxu0 0.0
    %876 = vmatpush1.msra.mxu0 %v834
    %877 = vmatprep.subr.mxu0 0.0
    %878 = vmatpush1.msra.mxu0 %v835
    %879 = vmatprep.subr.mxu0 0.0
    %880 = vmatpush1.msra.mxu0 %v836
    %881 = vmatprep.subr.mxu0 0.0
    %882 = vmatpush1.msra.mxu0 %v837
    %883 = vmatprep.subr.mxu0 0.0
    %884 = vmatpush1.msra.mxu0 %v838
    %885 = vmatprep.subr.mxu0 0.0
    %886 = vmatpush1.msra.mxu0 %v839
    %887 = vmatprep.subr.mxu0 0.0
    %888 = vmatpush1.msra.mxu0 %v840
    %889 = vmatprep.subr.mxu0 0.0
    %890 = vmatpush1.msra.mxu0 %v841
    %891 = vmatprep.subr.mxu0 0.0
    %892 = vmatpush1.msra.mxu0 %v842
    %893 = vmatprep.subr.mxu0 0.0
    %894 = vmatpush1.msra.mxu0 %v843
    %895 = vmatprep.subr.mxu0 0.0
    %896 = vmatpush1.msra.mxu0 %v844
    %897 = vmatprep.subr.mxu0 0.0
    %898 = vmatpush1.msra.mxu0 %v845
    %899 = vmatprep.subr.mxu0 0.0
    %900 = vmatpush1.msra.mxu0 %v846
    %901 = vmatprep.subr.mxu0 0.0
    %902 = vmatpush1.msra.mxu0 %v847
    %903 = vmatprep.subr.mxu0 0.0
    %904 = vmatpush1.msra.mxu0 %v848
    %905 = vmatprep.subr.mxu0 0.0
    %906 = vmatpush1.msra.mxu0 %v849
    %907 = vmatprep.subr.mxu0 0.0
    %908 = vmatpush1.msra.mxu0 %v850
    %909 = vmatprep.subr.mxu0 0.0
    %910 = vmatpush1.msra.mxu0 %v851
    %911 = vmatprep.subr.mxu0 0.0
    %912 = vmatpush1.msra.mxu0 %v852
    %913 = vmatprep.subr.mxu0 0.0
    %914 = vmatpush1.msra.mxu0 %v853
    %915 = vmatprep.subr.mxu0 0.0
    %916 = vmatpush1.msra.mxu0 %v854
    %917 = vmatprep.subr.mxu0 0.0
    %918 = vmatpush1.msra.mxu0 %v855
    %919 = vmatprep.subr.mxu0 0.0
    %920 = vmatpush1.msra.mxu0 %v856
    %921 = vmatprep.subr.mxu0 0.0
    %922 = vmatpush1.msra.mxu0 %v857
    %923 = vmatprep.mubr.f32.mxu0 %v39
    %924 = vmatmul.mubr.f32.gmra.mrb[0].mxu0 %v38
    %v925 = vpop.f32.mrb[0].mxu0
    %v926 = vadd.f32 0.0, %v925
    %v927 = vpop.f32.mrb[0].mxu0
    %928 = vdwg.mxu0
    %v929 = vadd.f32 %v858, %v926
    %930 = vst [vmem:[#allocation2 + $0x1] sm:$0x1] %v929
    // Predicated region
    $region26: #{facenet_forward.1} parent=1 // pred_check
      %p931 = pneg %p22
    $region27: #{facenet_forward.1} parent=1 // pred_check_branch
      %933 = sbr.rel (%p931) target = $region29
    $region28: #{facenet_forward.1} parent=1 // pred_region
      %v934 = vld [vmem:[#allocation2] sm:$0x3]
      %v935 = vmul.f32 %v934, 0.00390625
      %v936 = vld [vmem:[%s3] sm:$0xff]
      %v937 = vld [vmem:[%s3 + $0x8] sm:$0xff]
      %v938 = vld [vmem:[%s3 + $0x10] sm:$0xff]
      %v939 = vld [vmem:[%s3 + $0x18] sm:$0xff]
      %v940 = vld [vmem:[%s3 + $0x20] sm:$0xff]
      %v941 = vld [vmem:[%s3 + $0x28] sm:$0xff]
      %v942 = vld [vmem:[%s3 + $0x30] sm:$0xff]
      %v943 = vld [vmem:[%s3 + $0x38] sm:$0xff]
      %v944 = vld [vmem:[%s3 + $0x40] sm:$0xff]
      %v945 = vld [vmem:[%s3 + $0x48] sm:$0xff]
      %v946 = vld [vmem:[%s3 + $0x50] sm:$0xff]
      %v947 = vld [vmem:[%s3 + $0x58] sm:$0xff]
      %v948 = vld [vmem:[%s3 + $0x60] sm:$0xff]
      %v949 = vld [vmem:[%s3 + $0x68] sm:$0xff]
      %v950 = vld [vmem:[%s3 + $0x70] sm:$0xff]
      %v951 = vld [vmem:[%s3 + $0x78] sm:$0xff]
      %v952 = vld [vmem:[%s4 + $0x1] sm:$0x1]
      %v953 = vlaneseq
      %v954 = vshrl.u32 %v953, 7
      %v955 = vsub.s32 0, %v954
      %v956 = vrot.slane %v952, %v955
      %957 = vmatprep.subr.mxu0 0.0
      %958 = vmatpush1.msra.mxu0 %v936
      %959 = vmatprep.subr.mxu0 0.0
      %960 = vmatpush1.msra.mxu0 %v937
      %961 = vmatprep.subr.mxu0 0.0
      %962 = vmatpush1.msra.mxu0 %v938
      %963 = vmatprep.subr.mxu0 0.0
      %964 = vmatpush1.msra.mxu0 %v939
      %965 = vmatprep.subr.mxu0 0.0
      %966 = vmatpush1.msra.mxu0 %v940
      %967 = vmatprep.subr.mxu0 0.0
      %968 = vmatpush1.msra.mxu0 %v941
      %969 = vmatprep.subr.mxu0 0.0
      %970 = vmatpush1.msra.mxu0 %v942
      %971 = vmatprep.subr.mxu0 0.0
      %972 = vmatpush1.msra.mxu0 %v943
      %973 = vmatprep.subr.mxu0 0.0
      %974 = vmatpush1.msra.mxu0 %v944
      %975 = vmatprep.subr.mxu0 0.0
      %976 = vmatpush1.msra.mxu0 %v945
      %977 = vmatprep.subr.mxu0 0.0
      %978 = vmatpush1.msra.mxu0 %v946
      %979 = vmatprep.subr.mxu0 0.0
      %980 = vmatpush1.msra.mxu0 %v947
      %981 = vmatprep.subr.mxu0 0.0
      %982 = vmatpush1.msra.mxu0 %v948
      %983 = vmatprep.subr.mxu0 0.0
      %984 = vmatpush1.msra.mxu0 %v949
      %985 = vmatprep.subr.mxu0 0.0
      %986 = vmatpush1.msra.mxu0 %v950
      %987 = vmatprep.subr.mxu0 0.0
      %988 = vmatpush1.msra.mxu0 %v951
      %989 = vmatprep.subr.mxu0 0.0
      %990 = vmatpush1.msra.mxu0 0.0
      %991 = vmatprep.subr.mxu0 0.0
      %992 = vmatpush1.msra.mxu0 0.0
      %993 = vmatprep.subr.mxu0 0.0
      %994 = vmatpush1.msra.mxu0 0.0
      %995 = vmatprep.subr.mxu0 0.0
      %996 = vmatpush1.msra.mxu0 0.0
      %997 = vmatprep.subr.mxu0 0.0
      %998 = vmatpush1.msra.mxu0 0.0
      %999 = vmatprep.subr.mxu0 0.0
      %1000 = vmatpush1.msra.mxu0 0.0
      %1001 = vmatprep.subr.mxu0 0.0
      %1002 = vmatpush1.msra.mxu0 0.0
      %1003 = vmatprep.subr.mxu0 0.0
      %1004 = vmatpush1.msra.mxu0 0.0
      %1005 = vmatprep.subr.mxu0 0.0
      %1006 = vmatpush1.msra.mxu0 0.0
      %1007 = vmatprep.subr.mxu0 0.0
      %1008 = vmatpush1.msra.mxu0 0.0
      %1009 = vmatprep.subr.mxu0 0.0
      %1010 = vmatpush1.msra.mxu0 0.0
      %1011 = vmatprep.subr.mxu0 0.0
      %1012 = vmatpush1.msra.mxu0 0.0
      %1013 = vmatprep.subr.mxu0 0.0
      %1014 = vmatpush1.msra.mxu0 0.0
      %1015 = vmatprep.subr.mxu0 0.0
      %1016 = vmatpush1.msra.mxu0 0.0
      %1017 = vmatprep.subr.mxu0 0.0
      %1018 = vmatpush1.msra.mxu0 0.0
      %1019 = vmatprep.subr.mxu0 0.0
      %1020 = vmatpush1.msra.mxu0 0.0
      %1021 = vmatprep.mubr.f32.mxu0 0.0
      %1022 = vmatmul.mubr.f32.gmra.mrb[0].mxu0 %v935
      %v1023 = vpop.f32.mrb[0].mxu0
      %v1024 = vadd.f32 %v956, %v1023
      %v1025 = vpop.f32.mrb[0].mxu0
      %1026 = vdwg.mxu0
      %v1027 = vmax.f32 %v1024, 0.0
      %v1028 = vld [vmem:[%s1] sm:$0x3]
      %s1029 = scalar_lea.vmem %s3, 128
      %v1030 = vld [vmem:[%s1029] sm:$0xff]
      %v1031 = vld [vmem:[%s1029 + $0x8] sm:$0xff]
      %v1032 = vld [vmem:[%s1029 + $0x10] sm:$0xff]
      %v1033 = vld [vmem:[%s1029 + $0x18] sm:$0xff]
      %v1034 = vld [vmem:[%s1029 + $0x20] sm:$0xff]
      %v1035 = vld [vmem:[%s1029 + $0x28] sm:$0xff]
      %v1036 = vld [vmem:[%s1029 + $0x30] sm:$0xff]
      %v1037 = vld [vmem:[%s1029 + $0x38] sm:$0xff]
      %v1038 = vld [vmem:[%s1029 + $0x40] sm:$0xff]
      %v1039 = vld [vmem:[%s1029 + $0x48] sm:$0xff]
      %v1040 = vld [vmem:[%s1029 + $0x50] sm:$0xff]
      %v1041 = vld [vmem:[%s1029 + $0x58] sm:$0xff]
      %v1042 = vld [vmem:[%s1029 + $0x60] sm:$0xff]
      %v1043 = vld [vmem:[%s1029 + $0x68] sm:$0xff]
      %v1044 = vld [vmem:[%s1029 + $0x70] sm:$0xff]
      %v1045 = vld [vmem:[%s1029 + $0x78] sm:$0xff]
      %v1046 = vld [vmem:[%s4 + $0x2] sm:$0x1]
      %v1047 = vlaneseq
      %v1048 = vshrl.u32 %v1047, 7
      %v1049 = vsub.s32 0, %v1048
      %v1050 = vrot.slane %v1046, %v1049
      %1051 = vmatprep.subr.mxu0 0.0
      %1052 = vmatpush1.msra.mxu0 %v1030
      %1053 = vmatprep.subr.mxu0 0.0
      %1054 = vmatpush1.msra.mxu0 %v1031
      %1055 = vmatprep.subr.mxu0 0.0
      %1056 = vmatpush1.msra.mxu0 %v1032
      %1057 = vmatprep.subr.mxu0 0.0
      %1058 = vmatpush1.msra.mxu0 %v1033
      %1059 = vmatprep.subr.mxu0 0.0
      %1060 = vmatpush1.msra.mxu0 %v1034
      %1061 = vmatprep.subr.mxu0 0.0
      %1062 = vmatpush1.msra.mxu0 %v1035
      %1063 = vmatprep.subr.mxu0 0.0
      %1064 = vmatpush1.msra.mxu0 %v1036
      %1065 = vmatprep.subr.mxu0 0.0
      %1066 = vmatpush1.msra.mxu0 %v1037
      %1067 = vmatprep.subr.mxu0 0.0
      %1068 = vmatpush1.msra.mxu0 %v1038
      %1069 = vmatprep.subr.mxu0 0.0
      %1070 = vmatpush1.msra.mxu0 %v1039
      %1071 = vmatprep.subr.mxu0 0.0
      %1072 = vmatpush1.msra.mxu0 %v1040
      %1073 = vmatprep.subr.mxu0 0.0
      %1074 = vmatpush1.msra.mxu0 %v1041
      %1075 = vmatprep.subr.mxu0 0.0
      %1076 = vmatpush1.msra.mxu0 %v1042
      %1077 = vmatprep.subr.mxu0 0.0
      %1078 = vmatpush1.msra.mxu0 %v1043
      %1079 = vmatprep.subr.mxu0 0.0
      %1080 = vmatpush1.msra.mxu0 %v1044
      %1081 = vmatprep.subr.mxu0 0.0
      %1082 = vmatpush1.msra.mxu0 %v1045
      %1083 = vmatprep.subr.mxu0 0.0
      %1084 = vmatpush1.msra.mxu0 0.0
      %1085 = vmatprep.subr.mxu0 0.0
      %1086 = vmatpush1.msra.mxu0 0.0
      %1087 = vmatprep.subr.mxu0 0.0
      %1088 = vmatpush1.msra.mxu0 0.0
      %1089 = vmatprep.subr.mxu0 0.0
      %1090 = vmatpush1.msra.mxu0 0.0
      %1091 = vmatprep.subr.mxu0 0.0
      %1092 = vmatpush1.msra.mxu0 0.0
      %1093 = vmatprep.subr.mxu0 0.0
      %1094 = vmatpush1.msra.mxu0 0.0
      %1095 = vmatprep.subr.mxu0 0.0
      %1096 = vmatpush1.msra.mxu0 0.0
      %1097 = vmatprep.subr.mxu0 0.0
      %1098 = vmatpush1.msra.mxu0 0.0
      %1099 = vmatprep.subr.mxu0 0.0
      %1100 = vmatpush1.msra.mxu0 0.0
      %1101 = vmatprep.subr.mxu0 0.0
      %1102 = vmatpush1.msra.mxu0 0.0
      %1103 = vmatprep.subr.mxu0 0.0
      %1104 = vmatpush1.msra.mxu0 0.0
      %1105 = vmatprep.subr.mxu0 0.0
      %1106 = vmatpush1.msra.mxu0 0.0
      %1107 = vmatprep.subr.mxu0 0.0
      %1108 = vmatpush1.msra.mxu0 0.0
      %1109 = vmatprep.subr.mxu0 0.0
      %1110 = vmatpush1.msra.mxu0 0.0
      %1111 = vmatprep.subr.mxu0 0.0
      %1112 = vmatpush1.msra.mxu0 0.0
      %1113 = vmatprep.subr.mxu0 0.0
      %1114 = vmatpush1.msra.mxu0 0.0
      %1115 = vmatprep.mubr.f32.mxu0 0.0
      %1116 = vmatmul.mubr.f32.gmra.mrb[0].mxu0 %v1028
      %v1117 = vpop.f32.mrb[0].mxu0
      %v1118 = vadd.f32 %v1050, %v1117
      %v1119 = vpop.f32.mrb[0].mxu0
      %1120 = vdwg.mxu0
      %v1121 = vmax.f32 %v1118, 0.0
      %s1122 = scalar_lea.vmem %s3, 256
      %v1123 = vld [vmem:[%s1122] sm:$0xff]
      %v1124 = vld [vmem:[%s1122 + $0x8] sm:$0xff]
      %v1125 = vld [vmem:[%s1122 + $0x10] sm:$0xff]
      %v1126 = vld [vmem:[%s1122 + $0x18] sm:$0xff]
      %v1127 = vld [vmem:[%s1122 + $0x20] sm:$0xff]
      %v1128 = vld [vmem:[%s1122 + $0x28] sm:$0xff]
      %v1129 = vld [vmem:[%s1122 + $0x30] sm:$0xff]
      %v1130 = vld [vmem:[%s1122 + $0x38] sm:$0xff]
      %v1131 = vld [vmem:[%s1122 + $0x40] sm:$0xff]
      %v1132 = vld [vmem:[%s1122 + $0x48] sm:$0xff]
      %v1133 = vld [vmem:[%s1122 + $0x50] sm:$0xff]
      %v1134 = vld [vmem:[%s1122 + $0x58] sm:$0xff]
      %v1135 = vld [vmem:[%s1122 + $0x60] sm:$0xff]
      %v1136 = vld [vmem:[%s1122 + $0x68] sm:$0xff]
      %v1137 = vld [vmem:[%s1122 + $0x70] sm:$0xff]
      %v1138 = vld [vmem:[%s1122 + $0x78] sm:$0xff]
      %s1139 = scalar_lea.vmem %s3, 384
      %v1140 = vld [vmem:[%s1139] sm:$0xff]
      %v1141 = vld [vmem:[%s1139 + $0x8] sm:$0xff]
      %v1142 = vld [vmem:[%s1139 + $0x10] sm:$0xff]
      %v1143 = vld [vmem:[%s1139 + $0x18] sm:$0xff]
      %v1144 = vld [vmem:[%s1139 + $0x20] sm:$0xff]
      %v1145 = vld [vmem:[%s1139 + $0x28] sm:$0xff]
      %v1146 = vld [vmem:[%s1139 + $0x30] sm:$0xff]
      %v1147 = vld [vmem:[%s1139 + $0x38] sm:$0xff]
      %v1148 = vld [vmem:[%s1139 + $0x40] sm:$0xff]
      %v1149 = vld [vmem:[%s1139 + $0x48] sm:$0xff]
      %v1150 = vld [vmem:[%s1139 + $0x50] sm:$0xff]
      %v1151 = vld [vmem:[%s1139 + $0x58] sm:$0xff]
      %v1152 = vld [vmem:[%s1139 + $0x60] sm:$0xff]
      %v1153 = vld [vmem:[%s1139 + $0x68] sm:$0xff]
      %v1154 = vld [vmem:[%s1139 + $0x70] sm:$0xff]
      %v1155 = vld [vmem:[%s1139 + $0x78] sm:$0xff]
      %1156 = vmatprep.subr.mxu0 0.0
      %1157 = vmatpush1.msra.mxu0 %v1140
      %1158 = vmatprep.subr.mxu0 0.0
      %1159 = vmatpush1.msra.mxu0 %v1141
      %1160 = vmatprep.subr.mxu0 0.0
      %1161 = vmatpush1.msra.mxu0 %v1142
      %1162 = vmatprep.subr.mxu0 0.0
      %1163 = vmatpush1.msra.mxu0 %v1143
      %1164 = vmatprep.subr.mxu0 0.0
      %1165 = vmatpush1.msra.mxu0 %v1144
      %1166 = vmatprep.subr.mxu0 0.0
      %1167 = vmatpush1.msra.mxu0 %v1145
      %1168 = vmatprep.subr.mxu0 0.0
      %1169 = vmatpush1.msra.mxu0 %v1146
      %1170 = vmatprep.subr.mxu0 0.0
      %1171 = vmatpush1.msra.mxu0 %v1147
      %1172 = vmatprep.subr.mxu0 0.0
      %1173 = vmatpush1.msra.mxu0 %v1148
      %1174 = vmatprep.subr.mxu0 0.0
      %1175 = vmatpush1.msra.mxu0 %v1149
      %1176 = vmatprep.subr.mxu0 0.0
      %1177 = vmatpush1.msra.mxu0 %v1150
      %1178 = vmatprep.subr.mxu0 0.0
      %1179 = vmatpush1.msra.mxu0 %v1151
      %1180 = vmatprep.subr.mxu0 0.0
      %1181 = vmatpush1.msra.mxu0 %v1152
      %1182 = vmatprep.subr.mxu0 0.0
      %1183 = vmatpush1.msra.mxu0 %v1153
      %1184 = vmatprep.subr.mxu0 0.0
      %1185 = vmatpush1.msra.mxu0 %v1154
      %1186 = vmatprep.subr.mxu0 0.0
      %1187 = vmatpush1.msra.mxu0 %v1155
      %1188 = vmatprep.subr.mxu0 0.0
      %1189 = vmatpush1.msra.mxu0 0.0
      %1190 = vmatprep.subr.mxu0 0.0
      %1191 = vmatpush1.msra.mxu0 0.0
      %1192 = vmatprep.subr.mxu0 0.0
      %1193 = vmatpush1.msra.mxu0 0.0
      %1194 = vmatprep.subr.mxu0 0.0
      %1195 = vmatpush1.msra.mxu0 0.0
      %1196 = vmatprep.subr.mxu0 0.0
      %1197 = vmatpush1.msra.mxu0 0.0
      %1198 = vmatprep.subr.mxu0 0.0
      %1199 = vmatpush1.msra.mxu0 0.0
      %1200 = vmatprep.subr.mxu0 0.0
      %1201 = vmatpush1.msra.mxu0 0.0
      %1202 = vmatprep.subr.mxu0 0.0
      %1203 = vmatpush1.msra.mxu0 0.0
      %1204 = vmatprep.subr.mxu0 0.0
      %1205 = vmatpush1.msra.mxu0 0.0
      %1206 = vmatprep.subr.mxu0 0.0
      %1207 = vmatpush1.msra.mxu0 0.0
      %1208 = vmatprep.subr.mxu0 0.0
      %1209 = vmatpush1.msra.mxu0 0.0
      %1210 = vmatprep.subr.mxu0 0.0
      %1211 = vmatpush1.msra.mxu0 0.0
      %1212 = vmatprep.subr.mxu0 0.0
      %1213 = vmatpush1.msra.mxu0 0.0
      %1214 = vmatprep.subr.mxu0 0.0
      %1215 = vmatpush1.msra.mxu0 0.0
      %1216 = vmatprep.subr.mxu0 0.0
      %1217 = vmatpush1.msra.mxu0 0.0
      %1218 = vmatprep.subr.mxu0 0.0
      %1219 = vmatpush1.msra.mxu0 0.0
      %1220 = vmatprep.mubr.f32.mxu0 0.0
      %1221 = vmatmul.mubr.f32.gmra.mrb[0].mxu0 %v1121
      %v1222 = vpop.f32.mrb[0].mxu0
      %v1223 = vadd.f32 0.0, %v1222
      %v1224 = vpop.f32.mrb[0].mxu0
      %1225 = vdwg.mxu0
      %1226 = vmatprep.subr.mxu0 0.0
      %1227 = vmatpush1.msra.mxu0 %v1123
      %1228 = vmatprep.subr.mxu0 0.0
      %1229 = vmatpush1.msra.mxu0 %v1124
      %1230 = vmatprep.subr.mxu0 0.0
      %1231 = vmatpush1.msra.mxu0 %v1125
      %1232 = vmatprep.subr.mxu0 0.0
      %1233 = vmatpush1.msra.mxu0 %v1126
      %1234 = vmatprep.subr.mxu0 0.0
      %1235 = vmatpush1.msra.mxu0 %v1127
      %1236 = vmatprep.subr.mxu0 0.0
      %1237 = vmatpush1.msra.mxu0 %v1128
      %1238 = vmatprep.subr.mxu0 0.0
      %1239 = vmatpush1.msra.mxu0 %v1129
      %1240 = vmatprep.subr.mxu0 0.0
      %1241 = vmatpush1.msra.mxu0 %v1130
      %1242 = vmatprep.subr.mxu0 0.0
      %1243 = vmatpush1.msra.mxu0 %v1131
      %1244 = vmatprep.subr.mxu0 0.0
      %1245 = vmatpush1.msra.mxu0 %v1132
      %1246 = vmatprep.subr.mxu0 0.0
      %1247 = vmatpush1.msra.mxu0 %v1133
      %1248 = vmatprep.subr.mxu0 0.0
      %1249 = vmatpush1.msra.mxu0 %v1134
      %1250 = vmatprep.subr.mxu0 0.0
      %1251 = vmatpush1.msra.mxu0 %v1135
      %1252 = vmatprep.subr.mxu0 0.0
      %1253 = vmatpush1.msra.mxu0 %v1136
      %1254 = vmatprep.subr.mxu0 0.0
      %1255 = vmatpush1.msra.mxu0 %v1137
      %1256 = vmatprep.subr.mxu0 0.0
      %1257 = vmatpush1.msra.mxu0 %v1138
      %1258 = vmatprep.subr.mxu0 0.0
      %1259 = vmatpush1.msra.mxu0 0.0
      %1260 = vmatprep.subr.mxu0 0.0
      %1261 = vmatpush1.msra.mxu0 0.0
      %1262 = vmatprep.subr.mxu0 0.0
      %1263 = vmatpush1.msra.mxu0 0.0
      %1264 = vmatprep.subr.mxu0 0.0
      %1265 = vmatpush1.msra.mxu0 0.0
      %1266 = vmatprep.subr.mxu0 0.0
      %1267 = vmatpush1.msra.mxu0 0.0
      %1268 = vmatprep.subr.mxu0 0.0
      %1269 = vmatpush1.msra.mxu0 0.0
      %1270 = vmatprep.subr.mxu0 0.0
      %1271 = vmatpush1.msra.mxu0 0.0
      %1272 = vmatprep.subr.mxu0 0.0
      %1273 = vmatpush1.msra.mxu0 0.0
      %1274 = vmatprep.subr.mxu0 0.0
      %1275 = vmatpush1.msra.mxu0 0.0
      %1276 = vmatprep.subr.mxu0 0.0
      %1277 = vmatpush1.msra.mxu0 0.0
      %1278 = vmatprep.subr.mxu0 0.0
      %1279 = vmatpush1.msra.mxu0 0.0
      %1280 = vmatprep.subr.mxu0 0.0
      %1281 = vmatpush1.msra.mxu0 0.0
      %1282 = vmatprep.subr.mxu0 0.0
      %1283 = vmatpush1.msra.mxu0 0.0
      %1284 = vmatprep.subr.mxu0 0.0
      %1285 = vmatpush1.msra.mxu0 0.0
      %1286 = vmatprep.subr.mxu0 0.0
      %1287 = vmatpush1.msra.mxu0 0.0
      %1288 = vmatprep.subr.mxu0 0.0
      %1289 = vmatpush1.msra.mxu0 0.0
      %1290 = vmatprep.mubr.f32.mxu0 0.0
      %1291 = vmatmul.mubr.f32.gmra.mrb[0].mxu0 %v1027
      %v1292 = vpop.f32.mrb[0].mxu0
      %v1293 = vadd.f32 %v1223, %v1292
      %v1294 = vpop.f32.mrb[0].mxu0
      %1295 = vdwg.mxu0
      %v1296 = vld [vmem:[%s4 + $0x3] sm:$0x1]
      %v1297 = vlaneseq
      %v1298 = vshrl.u32 %v1297, 7
      %v1299 = vsub.s32 0, %v1298
      %v1300 = vrot.slane %v1296, %v1299
      %v1301 = vadd.f32 %v1293, %v1300
      %v1302 = vmax.f32 %v1301, 0.0
      %s1303 = scalar_lea.vmem %s3, 512
      %v1304 = vld [vmem:[%s1303] sm:$0xff]
      %v1305 = vld [vmem:[%s1303 + $0x8] sm:$0xff]
      %v1306 = vld [vmem:[%s1303 + $0x10] sm:$0xff]
      %v1307 = vld [vmem:[%s1303 + $0x18] sm:$0xff]
      %v1308 = vld [vmem:[%s1303 + $0x20] sm:$0xff]
      %v1309 = vld [vmem:[%s1303 + $0x28] sm:$0xff]
      %v1310 = vld [vmem:[%s1303 + $0x30] sm:$0xff]
      %v1311 = vld [vmem:[%s1303 + $0x38] sm:$0xff]
      %v1312 = vld [vmem:[%s1303 + $0x40] sm:$0xff]
      %v1313 = vld [vmem:[%s1303 + $0x48] sm:$0xff]
      %v1314 = vld [vmem:[%s1303 + $0x50] sm:$0xff]
      %v1315 = vld [vmem:[%s1303 + $0x58] sm:$0xff]
      %v1316 = vld [vmem:[%s1303 + $0x60] sm:$0xff]
      %v1317 = vld [vmem:[%s1303 + $0x68] sm:$0xff]
      %v1318 = vld [vmem:[%s1303 + $0x70] sm:$0xff]
      %v1319 = vld [vmem:[%s1303 + $0x78] sm:$0xff]
      %v1320 = vld [vmem:[%s4 + $0x4] sm:$0x1]
      %v1321 = vlaneseq
      %v1322 = vshrl.u32 %v1321, 7
      %v1323 = vsub.s32 0, %v1322
      %v1324 = vrot.slane %v1320, %v1323
      %1325 = vmatprep.subr.mxu0 0.0
      %1326 = vmatpush1.msra.mxu0 %v1304
      %1327 = vmatprep.subr.mxu0 0.0
      %1328 = vmatpush1.msra.mxu0 %v1305
      %1329 = vmatprep.subr.mxu0 0.0
      %1330 = vmatpush1.msra.mxu0 %v1306
      %1331 = vmatprep.subr.mxu0 0.0
      %1332 = vmatpush1.msra.mxu0 %v1307
      %1333 = vmatprep.subr.mxu0 0.0
      %1334 = vmatpush1.msra.mxu0 %v1308
      %1335 = vmatprep.subr.mxu0 0.0
      %1336 = vmatpush1.msra.mxu0 %v1309
      %1337 = vmatprep.subr.mxu0 0.0
      %1338 = vmatpush1.msra.mxu0 %v1310
      %1339 = vmatprep.subr.mxu0 0.0
      %1340 = vmatpush1.msra.mxu0 %v1311
      %1341 = vmatprep.subr.mxu0 0.0
      %1342 = vmatpush1.msra.mxu0 %v1312
      %1343 = vmatprep.subr.mxu0 0.0
      %1344 = vmatpush1.msra.mxu0 %v1313
      %1345 = vmatprep.subr.mxu0 0.0
      %1346 = vmatpush1.msra.mxu0 %v1314
      %1347 = vmatprep.subr.mxu0 0.0
      %1348 = vmatpush1.msra.mxu0 %v1315
      %1349 = vmatprep.subr.mxu0 0.0
      %1350 = vmatpush1.msra.mxu0 %v1316
      %1351 = vmatprep.subr.mxu0 0.0
      %1352 = vmatpush1.msra.mxu0 %v1317
      %1353 = vmatprep.subr.mxu0 0.0
      %1354 = vmatpush1.msra.mxu0 %v1318
      %1355 = vmatprep.subr.mxu0 0.0
      %1356 = vmatpush1.msra.mxu0 %v1319
      %1357 = vmatprep.subr.mxu0 0.0
      %1358 = vmatpush1.msra.mxu0 0.0
      %1359 = vmatprep.subr.mxu0 0.0
      %1360 = vmatpush1.msra.mxu0 0.0
      %1361 = vmatprep.subr.mxu0 0.0
      %1362 = vmatpush1.msra.mxu0 0.0
      %1363 = vmatprep.subr.mxu0 0.0
      %1364 = vmatpush1.msra.mxu0 0.0
      %1365 = vmatprep.subr.mxu0 0.0
      %1366 = vmatpush1.msra.mxu0 0.0
      %1367 = vmatprep.subr.mxu0 0.0
      %1368 = vmatpush1.msra.mxu0 0.0
      %1369 = vmatprep.subr.mxu0 0.0
      %1370 = vmatpush1.msra.mxu0 0.0
      %1371 = vmatprep.subr.mxu0 0.0
      %1372 = vmatpush1.msra.mxu0 0.0
      %1373 = vmatprep.subr.mxu0 0.0
      %1374 = vmatpush1.msra.mxu0 0.0
      %1375 = vmatprep.subr.mxu0 0.0
      %1376 = vmatpush1.msra.mxu0 0.0
      %1377 = vmatprep.subr.mxu0 0.0
      %1378 = vmatpush1.msra.mxu0 0.0
      %1379 = vmatprep.subr.mxu0 0.0
      %1380 = vmatpush1.msra.mxu0 0.0
      %1381 = vmatprep.subr.mxu0 0.0
      %1382 = vmatpush1.msra.mxu0 0.0
      %1383 = vmatprep.subr.mxu0 0.0
      %1384 = vmatpush1.msra.mxu0 0.0
      %1385 = vmatprep.subr.mxu0 0.0
      %1386 = vmatpush1.msra.mxu0 0.0
      %1387 = vmatprep.subr.mxu0 0.0
      %1388 = vmatpush1.msra.mxu0 0.0
      %1389 = vmatprep.mubr.f32.mxu0 0.0
      %1390 = vmatmul.mubr.f32.gmra.mrb[0].mxu0 %v1302
      %v1391 = vpop.f32.mrb[0].mxu0
      %v1392 = vadd.f32 %v1324, %v1391
      %v1393 = vpop.f32.mrb[0].mxu0
      %1394 = vdwg.mxu0
      %1395 = vst [vmem:[#allocation3] sm:$0x3] %v1392
    $region29: #{facenet_forward.1} parent=1 // pred_fallthru
      _
    // Predicated region
    $region30: #{facenet_forward.1} parent=1 // pred_check
      _
    $region31: #{facenet_forward.1} parent=1 // pred_check_branch
      %1397 = sbr.rel (0) target = $region33
    $region32: #{facenet_forward.1} parent=1 // pred_region
      %s1399 = ssub.s32 32, 32
      %1400 = vsyncadd [#allocation4], %s1399
      %s1402 = sshll.u32 [#allocation3], 4
      %s1403 = int_to_ptr.vmem [resolvable:$true] %s1402
      %1405 = dma.vmem_to_hbm [thread:$0]  %s1403, 32, %s5, [#allocation4]
    $region33: #{facenet_forward.1} parent=1 // pred_fallthru
      _
    // Predicated region
    $region34: #{facenet_forward.1} parent=1 // pred_check
      _
    $region35: #{facenet_forward.1} parent=1 // pred_check_branch
      %1407 = sbr.rel (0) target = $region37
    $region36: #{facenet_forward.1} parent=1 // pred_region
      %1408 = dma.done [#allocation4], 32
    $region37: #{facenet_forward.1} parent=1 // pred_fallthru
      _
    %1409 = vsyncpa [#allocation4], 1

</llo_original>
